<compile_context>
chip_gen: v7x
topology: tpu7x:2x2x1
jax: 0.10.0
libtpu: 0.0.40
codegen_flags: <defaults>
</compile_context>

<pallas_src>
import jax
import jax.numpy as jnp
from jax import lax
from jax.experimental import pallas as pl
from jax.experimental.pallas import tpu as pltpu


def _round_up(n, m):
    return ((n + m - 1) // m) * m


def rnn_kernel(x_ref, h_init_ref,
               wih0_ref, whh0_ref, b0_ref,
               wih1_ref, whh1_ref, b1_ref,
               wfc_ref, bfc_ref,
               out_ref, hn_ref,
               xin_ref, rbuf_ref):
    seq, bb, input_size = x_ref.shape
    hidden = whh0_ref.shape[0]

    # Recurrent weights: small, loaded once, kept live across the recurrence.
    # They arrive pre-cast to bf16 (MXU-native); biases stay f32.
    whh0 = whh0_ref[...]            # (hidden, hidden)   bf16
    wih1 = wih1_ref[...]            # (hidden, hidden)   bf16
    whh1 = whh1_ref[...]            # (hidden, hidden)   bf16
    b1 = b1_ref[...]                # (1, hidden)        f32

    # ---- Hoisted layer-0 input projection ---------------------------------
    # x has no dependence on h, so the whole (seq, bb, hidden) projection is
    # one vectorized VPU pass, off the serial per-timestep critical path.
    if input_size == 1:
        xin_ref[...] = x_ref[...] * wih0_ref[...] + b0_ref[...]
    else:
        x2 = x_ref[...].reshape(seq * bb, input_size)
        xin2 = jnp.dot(x2, wih0_ref[...],
                       preferred_element_type=jnp.float32) + b0_ref[...]
        xin_ref[...] = xin2.reshape(seq, bb, hidden)

    # ---- Wavefront-pipelined recurrence -----------------------------------
    # Iteration i computes layer-0 at time i and layer-1 at time i-1; the two
    # matmul+tanh chains are data independent within an iteration, so per-step
    # latency trends toward max(layer0, layer1) instead of their sum.

    # Prologue: layer-0 at t = 0.
    h0 = jnp.tanh(
        xin_ref[0]
        + jnp.dot(h_init_ref[0].astype(jnp.bfloat16), whh0,
                  preferred_element_type=jnp.float32))
    h1 = h_init_ref[1]              # f32, h1_{-1}

    def step(i, carry):
        h0, h1 = carry              # h0 = h0_{i-1}, h1 = h1_{i-2}   (f32)
        h0_bf = h0.astype(jnp.bfloat16)
        h1_bf = h1.astype(jnp.bfloat16)

        # Layer 0 at time i.
        h0n = jnp.tanh(
            xin_ref[i]
            + jnp.dot(h0_bf, whh0, preferred_element_type=jnp.float32))

        # Layer 1 at time i-1 (uses h0_{i-1}, h1_{i-2}); two independent
        # K=hidden matmuls -> no per-step cross-lane concat on the chain.
        h1n = jnp.tanh(
            jnp.dot(h0_bf, wih1, preferred_element_type=jnp.float32)
            + jnp.dot(h1_bf, whh1, preferred_element_type=jnp.float32)
            + b1)

        # Store the top-layer output of time i-1 in the 2-D (seq*bb, hidden)
        # layout consumed by the FC head (sublane-aligned dynamic store).
        row = pl.multiple_of((i - 1) * bb, bb)
        rbuf_ref[pl.ds(row, bb), :] = h1n
        return (h0n, h1n)

    unroll = max(1, min(seq - 1, 8))
    h0, h1 = lax.fori_loop(1, seq, step, (h0, h1), unroll=unroll)

    # Epilogue: layer-1 at t = seq-1.
    h1 = jnp.tanh(
        jnp.dot(h0.astype(jnp.bfloat16), wih1,
                preferred_element_type=jnp.float32)
        + jnp.dot(h1.astype(jnp.bfloat16), whh1,
                  preferred_element_type=jnp.float32)
        + b1)
    rbuf_ref[pl.ds((seq - 1) * bb, bb), :] = h1

    hn_ref[0] = h0
    hn_ref[1] = h1

    # ---- FC head over every timestep of the top layer ---------------------
    # Emit lane-dense as (output_size, seq*bb): one f32 MXU matmul off the
    # serial chain, unmasked lane-major store (vs. width-1 masked stores).
    # NOTE: for very long sequences the seq-proportional rbuf scratch should
    # be chunked over seq (extra grid axis / HBM streaming) to stay within
    # v7x's smaller 64 MiB VMEM; at these shapes it is ~16 KiB.
    r = rbuf_ref[...]               # (seq*bb, hidden) f32
    out = lax.dot_general(wfc_ref[...], r, (((1,), (1,)), ((), ())),
                          preferred_element_type=jnp.float32) + bfc_ref[...]
    out_ref[...] = out


def rnn_forward(x, hidden, params):
    """x: (batch, seq, input_size); hidden: (n_layers=2, batch, hidden_dim)."""
    batch, seq, input_size = x.shape
    n_layers, _, hidden_dim = hidden.shape
    output_size = params["w_fc"].shape[0]
    assert n_layers == 2

    # Batch tile: multiple of the 8-row sublane group; one grid step per tile.
    # dimension_semantics=("parallel",) lets big batches shard across the two
    # TensorCores on v7x and gives pipelined (double-buffered) DMA of x.
    bb = min(_round_up(batch, 8), 64)
    batch_p = _round_up(batch, bb)
    nb = batch_p // bb
    pad_b = batch_p - batch

    # Time-major for the kernel; pad batch with zero rows (row-wise recurrence
    # means padded rows never touch real rows; they are sliced off below).
    x_tm = jnp.transpose(x, (1, 0, 2)).astype(jnp.float32)      # (seq, b, in)
    x_tm = jnp.pad(x_tm, ((0, 0), (0, pad_b), (0, 0)))
    h_init = jnp.pad(hidden.astype(jnp.float32), ((0, 0), (0, pad_b), (0, 0)))

    # Pre-transposed weights.  Recurrent matmul operands pre-cast to bf16
    # (MXU-native); input projection, biases and FC head stay f32.
    wih0 = params["w_ih0"].T.astype(jnp.float32)                # (in, hidden)
    b0 = (params["b_ih0"] + params["b_hh0"]).reshape(1, hidden_dim)
    whh0 = params["w_hh0"].T.astype(jnp.bfloat16)               # (hid, hid)
    wih1 = params["w_ih1"].T.astype(jnp.bfloat16)               # (hid, hid)
    whh1 = params["w_hh1"].T.astype(jnp.bfloat16)               # (hid, hid)
    b1 = (params["b_ih1"] + params["b_hh1"]).reshape(1, hidden_dim)
    wfc = params["w_fc"].astype(jnp.float32)                    # (out, hidden)
    bfc = params["b_fc"].reshape(output_size, 1).astype(jnp.float32)

    def full(shape):
        return pl.BlockSpec(shape, lambda b, _s=shape: (0,) * len(_s))

    out3, hn = pl.pallas_call(
        rnn_kernel,
        grid=(nb,),
        out_shape=(
            jax.ShapeDtypeStruct((nb, output_size, seq * bb), jnp.float32),
            jax.ShapeDtypeStruct((n_layers, batch_p, hidden_dim), jnp.float32),
        ),
        in_specs=[
            pl.BlockSpec((seq, bb, input_size), lambda b: (0, b, 0)),       # x
            pl.BlockSpec((n_layers, bb, hidden_dim), lambda b: (0, b, 0)),  # h0
            full((input_size, hidden_dim)),      # wih0  (f32)
            full((hidden_dim, hidden_dim)),      # whh0  (bf16)
            full((1, hidden_dim)),               # b0    (f32)
            full((hidden_dim, hidden_dim)),      # wih1  (bf16)
            full((hidden_dim, hidden_dim)),      # whh1  (bf16)
            full((1, hidden_dim)),               # b1    (f32)
            full((output_size, hidden_dim)),     # wfc   (f32)
            full((output_size, 1)),              # bfc   (f32)
        ],
        out_specs=(
            pl.BlockSpec((None, output_size, seq * bb), lambda b: (b, 0, 0)),
            pl.BlockSpec((n_layers, bb, hidden_dim), lambda b: (0, b, 0)),
        ),
        scratch_shapes=[
            pltpu.VMEM((seq, bb, hidden_dim), jnp.float32),      # hoisted xin
            pltpu.VMEM((seq * bb, hidden_dim), jnp.float32),     # rbuf
        ],
        compiler_params=pltpu.CompilerParams(
            dimension_semantics=("parallel",)),
    )(x_tm, h_init, wih0, whh0, b0, wih1, whh1, b1, wfc, bfc)

    # (nb, out, seq*bb) -> (batch, seq, out) -> (batch*seq, out)
    out = out3.reshape(nb, output_size, seq, bb)
    out = jnp.transpose(out, (0, 3, 2, 1)).reshape(batch_p, seq, output_size)
    out = out[:batch].reshape(batch * seq, output_size)
    return out, hn[:, :batch, :]


def rnn_reference(x, hidden, params):
    """Pure-JAX reference mirroring torch nn.RNN(tanh, 2 layers) + Linear."""
    batch, seq, _ = x.shape
    h0, h1 = hidden[0], hidden[1]
    outs = []
    for t in range(seq):
        x_t = x[:, t, :]
        h0 = jnp.tanh(x_t @ params["w_ih0"].T + params["b_ih0"]
                      + h0 @ params["w_hh0"].T + params["b_hh0"])
        h1 = jnp.tanh(h0 @ params["w_ih1"].T + params["b_ih1"]
                      + h1 @ params["w_hh1"].T + params["b_hh1"])
        outs.append(h1)
    r_out = jnp.stack(outs, axis=1)                       # (batch, seq, hidden)
    r_out = r_out.reshape(-1, r_out.shape[-1])
    out = r_out @ params["w_fc"].T + params["b_fc"]
    return out, jnp.stack([h0, h1], axis=0)


def init_params(key, input_size, hidden_dim, output_size):
    ks = jax.random.split(key, 10)
    s = 1.0 / jnp.sqrt(hidden_dim)
    u = lambda k, shape: jax.random.uniform(k, shape, jnp.float32, -s, s)
    return {
        "w_ih0": u(ks[0], (hidden_dim, input_size)),
        "w_hh0": u(ks[1], (hidden_dim, hidden_dim)),
        "b_ih0": u(ks[2], (hidden_dim,)),
        "b_hh0": u(ks[3], (hidden_dim,)),
        "w_ih1": u(ks[4], (hidden_dim, hidden_dim)),
        "w_hh1": u(ks[5], (hidden_dim, hidden_dim)),
        "b_ih1": u(ks[6], (hidden_dim,)),
        "b_hh1": u(ks[7], (hidden_dim,)),
        "w_fc":  u(ks[8], (output_size, hidden_dim)),
        "b_fc":  u(ks[9], (output_size,)),
    }


if __name__ == "__main__":
    input_size = 1
    hidden_dim = 64
    n_layers = 2
    output_size = 1
    batch = 2
    seq = 8

    key = jax.random.PRNGKey(0)
    kx, kh, kp = jax.random.split(key, 3)

    x = jax.random.normal(kx, (batch, seq, input_size), jnp.float32)
    hidden = jax.random.normal(kh, (n_layers, batch, hidden_dim), jnp.float32)
    params = init_params(kp, input_size, hidden_dim, output_size)

    out, hn = rnn_forward(x, hidden, params)
    out, hn = jax.block_until_ready(out), jax.block_until_ready(hn)

    out_ref, hn_ref = rnn_reference(x, hidden, params)
    assert out.shape == (batch * seq, output_size)
    assert hn.shape == (n_layers, batch, hidden_dim)
    # bf16 MXU operands in the recurrence -> validate at a bf16-appropriate
    # tolerance (accumulation, biases and tanh remain f32).
    assert jnp.allclose(out, out_ref, atol=2e-2, rtol=2e-2)
    assert jnp.allclose(hn, hn_ref, atol=2e-2, rtol=2e-2)

    print("KERNEL_OK")
</pallas_src>

<mosaic_0001>
module attributes {stable_mosaic.version = 11 : i64} {
  func.func @rnn_kernel(%arg0: i32, %arg1: memref<8x8x1xf32, #tpu.memory_space<vmem>>, %arg2: memref<2x8x64xf32, #tpu.memory_space<vmem>>, %arg3: memref<1x64xf32, #tpu.memory_space<vmem>>, %arg4: memref<64x64xbf16, #tpu.memory_space<vmem>>, %arg5: memref<1x64xf32, #tpu.memory_space<vmem>>, %arg6: memref<64x64xbf16, #tpu.memory_space<vmem>>, %arg7: memref<64x64xbf16, #tpu.memory_space<vmem>>, %arg8: memref<1x64xf32, #tpu.memory_space<vmem>>, %arg9: memref<1x64xf32, #tpu.memory_space<vmem>>, %arg10: memref<1x1xf32, #tpu.memory_space<vmem>>, %arg11: memref<1x1x64xf32, #tpu.memory_space<vmem>>, %arg12: memref<2x8x64xf32, #tpu.memory_space<vmem>>, %arg13: memref<8x8x64xf32, #tpu.memory_space<vmem>>, %arg14: memref<64x64xf32, #tpu.memory_space<vmem>>) attributes {dimension_semantics = [#tpu.dimension_semantics<parallel>], iteration_bounds = array<i64: 1>, scalar_prefetch = 0 : i64, scratch_operands = 2 : i64, tpu.core_type = #tpu.core_type<tc>, window_params = [{transform_indices = @transform_0, window_bounds = array<i64: 8, 8, 1>}, {transform_indices = @transform_1, window_bounds = array<i64: 2, 8, 64>}, {pipeline_mode = #tpu.pipeline_mode<synchronous>, transform_indices = @transform_2, window_bounds = array<i64: 1, 64>}, {pipeline_mode = #tpu.pipeline_mode<synchronous>, transform_indices = @transform_3, window_bounds = array<i64: 64, 64>}, {pipeline_mode = #tpu.pipeline_mode<synchronous>, transform_indices = @transform_4, window_bounds = array<i64: 1, 64>}, {pipeline_mode = #tpu.pipeline_mode<synchronous>, transform_indices = @transform_5, window_bounds = array<i64: 64, 64>}, {pipeline_mode = #tpu.pipeline_mode<synchronous>, transform_indices = @transform_6, window_bounds = array<i64: 64, 64>}, {pipeline_mode = #tpu.pipeline_mode<synchronous>, transform_indices = @transform_7, window_bounds = array<i64: 1, 64>}, {pipeline_mode = #tpu.pipeline_mode<synchronous>, transform_indices = @transform_8, window_bounds = array<i64: 1, 64>}, {pipeline_mode = #tpu.pipeline_mode<synchronous>, transform_indices = @transform_9, window_bounds = array<i64: 1, 1>}, {transform_indices = @transform_10, window_bounds = array<i64: 1, 1, 64>}, {transform_indices = @transform_11, window_bounds = array<i64: 2, 8, 64>}]} {
    %c0 = arith.constant 0 : index
    %c0_0 = arith.constant 0 : index
    %0 = vector.load %arg4[%c0, %c0_0] : memref<64x64xbf16, #tpu.memory_space<vmem>>, vector<64x64xbf16>
    %c0_1 = arith.constant 0 : index
    %c0_2 = arith.constant 0 : index
    %1 = vector.load %arg6[%c0_1, %c0_2] : memref<64x64xbf16, #tpu.memory_space<vmem>>, vector<64x64xbf16>
    %c0_3 = arith.constant 0 : index
    %c0_4 = arith.constant 0 : index
    %2 = vector.load %arg7[%c0_3, %c0_4] : memref<64x64xbf16, #tpu.memory_space<vmem>>, vector<64x64xbf16>
    %c0_5 = arith.constant 0 : index
    %c0_6 = arith.constant 0 : index
    %3 = vector.load %arg8[%c0_5, %c0_6] : memref<1x64xf32, #tpu.memory_space<vmem>>, vector<1x64xf32>
    %c0_7 = arith.constant 0 : index
    %c0_8 = arith.constant 0 : index
    %c0_9 = arith.constant 0 : index
    %4 = vector.load %arg1[%c0_7, %c0_8, %c0_9] : memref<8x8x1xf32, #tpu.memory_space<vmem>>, vector<8x8x1xf32>
    %c0_10 = arith.constant 0 : index
    %c0_11 = arith.constant 0 : index
    %5 = vector.load %arg3[%c0_10, %c0_11] : memref<1x64xf32, #tpu.memory_space<vmem>>, vector<1x64xf32>
    %6 = vector.shape_cast %5 : vector<1x64xf32> to vector<1x1x64xf32>
    %7 = vector.broadcast %4 : vector<8x8x1xf32> to vector<8x8x64xf32>
    %8 = vector.broadcast %6 : vector<1x1x64xf32> to vector<8x8x64xf32>
    %9 = arith.mulf %7, %8 : vector<8x8x64xf32>
    %c0_12 = arith.constant 0 : index
    %c0_13 = arith.constant 0 : index
    %10 = vector.load %arg5[%c0_12, %c0_13] : memref<1x64xf32, #tpu.memory_space<vmem>>, vector<1x64xf32>
    %11 = vector.shape_cast %10 : vector<1x64xf32> to vector<1x1x64xf32>
    %12 = vector.broadcast %11 : vector<1x1x64xf32> to vector<8x8x64xf32>
    %13 = arith.addf %9, %12 : vector<8x8x64xf32>
    %c0_14 = arith.constant 0 : index
    %c0_15 = arith.constant 0 : index
    %c0_16 = arith.constant 0 : index
    %14 = vector.load %arg13[%c0_14, %c0_15, %c0_16] : memref<8x8x64xf32, #tpu.memory_space<vmem>>, vector<8x8x64xf32>
    tpu.vector_store %arg13[%c0_14, %c0_15, %c0_16], %13 {strides = array<i32>} : memref<8x8x64xf32, #tpu.memory_space<vmem>>, vector<8x8x64xf32>,
    %c0_17 = arith.constant 0 : index
    %c0_18 = arith.constant 0 : index
    %c0_19 = arith.constant 0 : index
    %15 = vector.load %arg13[%c0_17, %c0_18, %c0_19] : memref<8x8x64xf32, #tpu.memory_space<vmem>>, vector<1x8x64xf32>
    %16 = vector.shape_cast %15 : vector<1x8x64xf32> to vector<8x64xf32>
    %c0_20 = arith.constant 0 : index
    %c0_21 = arith.constant 0 : index
    %c0_22 = arith.constant 0 : index
    %17 = vector.load %arg2[%c0_20, %c0_21, %c0_22] : memref<2x8x64xf32, #tpu.memory_space<vmem>>, vector<1x8x64xf32>
    %18 = vector.shape_cast %17 : vector<1x8x64xf32> to vector<8x64xf32>
    %19 = arith.truncf %18 : vector<8x64xf32> to vector<8x64xbf16>
    %cst = arith.constant dense<0.000000e+00> : vector<8x64xf32>
    %20 = tpu.matmul %19, %0, %cst {dimension_numbers = #tpu.dot_dimension_numbers<[1], [0], [0], [1], [0, 0, 1, 1], [], []>} : vector<8x64xbf16>, vector<64x64xbf16>, vector<8x64xf32> -> vector<8x64xf32>
    %21 = arith.addf %16, %20 : vector<8x64xf32>
    %22 = math.tanh %21 : vector<8x64xf32>
    %c1 = arith.constant 1 : index
    %c0_23 = arith.constant 0 : index
    %c0_24 = arith.constant 0 : index
    %23 = vector.load %arg2[%c1, %c0_23, %c0_24] : memref<2x8x64xf32, #tpu.memory_space<vmem>>, vector<1x8x64xf32>
    %24 = vector.shape_cast %23 : vector<1x8x64xf32> to vector<8x64xf32>
    %c1_i32 = arith.constant 1 : i32
    %25 = arith.truncf %22 : vector<8x64xf32> to vector<8x64xbf16>
    %26 = arith.truncf %24 : vector<8x64xf32> to vector<8x64xbf16>
    %27 = arith.index_cast %c1_i32 : i32 to index
    %c0_25 = arith.constant 0 : index
    %c0_26 = arith.constant 0 : index
    %28 = vector.load %arg13[%27, %c0_25, %c0_26] : memref<8x8x64xf32, #tpu.memory_space<vmem>>, vector<1x8x64xf32>
    %29 = vector.shape_cast %28 : vector<1x8x64xf32> to vector<8x64xf32>
    %cst_27 = arith.constant dense<0.000000e+00> : vector<8x64xf32>
    %30 = tpu.matmul %25, %0, %cst_27 {dimension_numbers = #tpu.dot_dimension_numbers<[1], [0], [0], [1], [0, 0, 1, 1], [], []>} : vector<8x64xbf16>, vector<64x64xbf16>, vector<8x64xf32> -> vector<8x64xf32>
    %31 = arith.addf %29, %30 : vector<8x64xf32>
    %32 = math.tanh %31 : vector<8x64xf32>
    %cst_28 = arith.constant dense<0.000000e+00> : vector<8x64xf32>
    %33 = tpu.matmul %25, %1, %cst_28 {dimension_numbers = #tpu.dot_dimension_numbers<[1], [0], [0], [1], [0, 0, 1, 1], [], []>} : vector<8x64xbf16>, vector<64x64xbf16>, vector<8x64xf32> -> vector<8x64xf32>
    %cst_29 = arith.constant dense<0.000000e+00> : vector<8x64xf32>
    %34 = tpu.matmul %26, %2, %cst_29 {dimension_numbers = #tpu.dot_dimension_numbers<[1], [0], [0], [1], [0, 0, 1, 1], [], []>} : vector<8x64xbf16>, vector<64x64xbf16>, vector<8x64xf32> -> vector<8x64xf32>
    %35 = arith.addf %33, %34 : vector<8x64xf32>
    %36 = vector.broadcast %3 : vector<1x64xf32> to vector<8x64xf32>
    %37 = arith.addf %35, %36 : vector<8x64xf32>
    %38 = math.tanh %37 : vector<8x64xf32>
    %c1_i32_30 = arith.constant 1 : i32
    %39 = arith.subi %c1_i32, %c1_i32_30 : i32
    %c8_i32 = arith.constant 8 : i32
    %40 = arith.muli %39, %c8_i32 : i32
    %41 = tpu.assume_multiple %40, 8 : i32
    %42 = arith.index_cast %41 : i32 to index
    %c0_31 = arith.constant 0 : index
    %43 = vector.load %arg14[%42, %c0_31] : memref<64x64xf32, #tpu.memory_space<vmem>>, vector<8x64xf32>
    tpu.vector_store %arg14[%42, %c0_31], %38 {strides = array<i32>} : memref<64x64xf32, #tpu.memory_space<vmem>>, vector<8x64xf32>,
    %c2_i32 = arith.constant 2 : i32
    %44 = arith.truncf %32 : vector<8x64xf32> to vector<8x64xbf16>
    %45 = arith.truncf %38 : vector<8x64xf32> to vector<8x64xbf16>
    %46 = arith.index_cast %c2_i32 : i32 to index
    %c0_32 = arith.constant 0 : index
    %c0_33 = arith.constant 0 : index
    %47 = vector.load %arg13[%46, %c0_32, %c0_33] : memref<8x8x64xf32, #tpu.memory_space<vmem>>, vector<1x8x64xf32>
    %48 = vector.shape_cast %47 : vector<1x8x64xf32> to vector<8x64xf32>
    %cst_34 = arith.constant dense<0.000000e+00> : vector<8x64xf32>
    %49 = tpu.matmul %44, %0, %cst_34 {dimension_numbers = #tpu.dot_dimension_numbers<[1], [0], [0], [1], [0, 0, 1, 1], [], []>} : vector<8x64xbf16>, vector<64x64xbf16>, vector<8x64xf32> -> vector<8x64xf32>
    %50 = arith.addf %48, %49 : vector<8x64xf32>
    %51 = math.tanh %50 : vector<8x64xf32>
    %cst_35 = arith.constant dense<0.000000e+00> : vector<8x64xf32>
    %52 = tpu.matmul %44, %1, %cst_35 {dimension_numbers = #tpu.dot_dimension_numbers<[1], [0], [0], [1], [0, 0, 1, 1], [], []>} : vector<8x64xbf16>, vector<64x64xbf16>, vector<8x64xf32> -> vector<8x64xf32>
    %cst_36 = arith.constant dense<0.000000e+00> : vector<8x64xf32>
    %53 = tpu.matmul %45, %2, %cst_36 {dimension_numbers = #tpu.dot_dimension_numbers<[1], [0], [0], [1], [0, 0, 1, 1], [], []>} : vector<8x64xbf16>, vector<64x64xbf16>, vector<8x64xf32> -> vector<8x64xf32>
    %54 = arith.addf %52, %53 : vector<8x64xf32>
    %55 = vector.broadcast %3 : vector<1x64xf32> to vector<8x64xf32>
    %56 = arith.addf %54, %55 : vector<8x64xf32>
    %57 = math.tanh %56 : vector<8x64xf32>
    %c1_i32_37 = arith.constant 1 : i32
    %58 = arith.subi %c2_i32, %c1_i32_37 : i32
    %c8_i32_38 = arith.constant 8 : i32
    %59 = arith.muli %58, %c8_i32_38 : i32
    %60 = tpu.assume_multiple %59, 8 : i32
    %61 = arith.index_cast %60 : i32 to index
    %c0_39 = arith.constant 0 : index
    %62 = vector.load %arg14[%61, %c0_39] : memref<64x64xf32, #tpu.memory_space<vmem>>, vector<8x64xf32>
    tpu.vector_store %arg14[%61, %c0_39], %57 {strides = array<i32>} : memref<64x64xf32, #tpu.memory_space<vmem>>, vector<8x64xf32>,
    %c3_i32 = arith.constant 3 : i32
    %63 = arith.truncf %51 : vector<8x64xf32> to vector<8x64xbf16>
    %64 = arith.truncf %57 : vector<8x64xf32> to vector<8x64xbf16>
    %65 = arith.index_cast %c3_i32 : i32 to index
    %c0_40 = arith.constant 0 : index
    %c0_41 = arith.constant 0 : index
    %66 = vector.load %arg13[%65, %c0_40, %c0_41] : memref<8x8x64xf32, #tpu.memory_space<vmem>>, vector<1x8x64xf32>
    %67 = vector.shape_cast %66 : vector<1x8x64xf32> to vector<8x64xf32>
    %cst_42 = arith.constant dense<0.000000e+00> : vector<8x64xf32>
    %68 = tpu.matmul %63, %0, %cst_42 {dimension_numbers = #tpu.dot_dimension_numbers<[1], [0], [0], [1], [0, 0, 1, 1], [], []>} : vector<8x64xbf16>, vector<64x64xbf16>, vector<8x64xf32> -> vector<8x64xf32>
    %69 = arith.addf %67, %68 : vector<8x64xf32>
    %70 = math.tanh %69 : vector<8x64xf32>
    %cst_43 = arith.constant dense<0.000000e+00> : vector<8x64xf32>
    %71 = tpu.matmul %63, %1, %cst_43 {dimension_numbers = #tpu.dot_dimension_numbers<[1], [0], [0], [1], [0, 0, 1, 1], [], []>} : vector<8x64xbf16>, vector<64x64xbf16>, vector<8x64xf32> -> vector<8x64xf32>
    %cst_44 = arith.constant dense<0.000000e+00> : vector<8x64xf32>
    %72 = tpu.matmul %64, %2, %cst_44 {dimension_numbers = #tpu.dot_dimension_numbers<[1], [0], [0], [1], [0, 0, 1, 1], [], []>} : vector<8x64xbf16>, vector<64x64xbf16>, vector<8x64xf32> -> vector<8x64xf32>
    %73 = arith.addf %71, %72 : vector<8x64xf32>
    %74 = vector.broadcast %3 : vector<1x64xf32> to vector<8x64xf32>
    %75 = arith.addf %73, %74 : vector<8x64xf32>
    %76 = math.tanh %75 : vector<8x64xf32>
    %c1_i32_45 = arith.constant 1 : i32
    %77 = arith.subi %c3_i32, %c1_i32_45 : i32
    %c8_i32_46 = arith.constant 8 : i32
    %78 = arith.muli %77, %c8_i32_46 : i32
    %79 = tpu.assume_multiple %78, 8 : i32
    %80 = arith.index_cast %79 : i32 to index
    %c0_47 = arith.constant 0 : index
    %81 = vector.load %arg14[%80, %c0_47] : memref<64x64xf32, #tpu.memory_space<vmem>>, vector<8x64xf32>
    tpu.vector_store %arg14[%80, %c0_47], %76 {strides = array<i32>} : memref<64x64xf32, #tpu.memory_space<vmem>>, vector<8x64xf32>,
    %c4_i32 = arith.constant 4 : i32
    %82 = arith.truncf %70 : vector<8x64xf32> to vector<8x64xbf16>
    %83 = arith.truncf %76 : vector<8x64xf32> to vector<8x64xbf16>
    %84 = arith.index_cast %c4_i32 : i32 to index
    %c0_48 = arith.constant 0 : index
    %c0_49 = arith.constant 0 : index
    %85 = vector.load %arg13[%84, %c0_48, %c0_49] : memref<8x8x64xf32, #tpu.memory_space<vmem>>, vector<1x8x64xf32>
    %86 = vector.shape_cast %85 : vector<1x8x64xf32> to vector<8x64xf32>
    %cst_50 = arith.constant dense<0.000000e+00> : vector<8x64xf32>
    %87 = tpu.matmul %82, %0, %cst_50 {dimension_numbers = #tpu.dot_dimension_numbers<[1], [0], [0], [1], [0, 0, 1, 1], [], []>} : vector<8x64xbf16>, vector<64x64xbf16>, vector<8x64xf32> -> vector<8x64xf32>
    %88 = arith.addf %86, %87 : vector<8x64xf32>
    %89 = math.tanh %88 : vector<8x64xf32>
    %cst_51 = arith.constant dense<0.000000e+00> : vector<8x64xf32>
    %90 = tpu.matmul %82, %1, %cst_51 {dimension_numbers = #tpu.dot_dimension_numbers<[1], [0], [0], [1], [0, 0, 1, 1], [], []>} : vector<8x64xbf16>, vector<64x64xbf16>, vector<8x64xf32> -> vector<8x64xf32>
    %cst_52 = arith.constant dense<0.000000e+00> : vector<8x64xf32>
    %91 = tpu.matmul %83, %2, %cst_52 {dimension_numbers = #tpu.dot_dimension_numbers<[1], [0], [0], [1], [0, 0, 1, 1], [], []>} : vector<8x64xbf16>, vector<64x64xbf16>, vector<8x64xf32> -> vector<8x64xf32>
    %92 = arith.addf %90, %91 : vector<8x64xf32>
    %93 = vector.broadcast %3 : vector<1x64xf32> to vector<8x64xf32>
    %94 = arith.addf %92, %93 : vector<8x64xf32>
    %95 = math.tanh %94 : vector<8x64xf32>
    %c1_i32_53 = arith.constant 1 : i32
    %96 = arith.subi %c4_i32, %c1_i32_53 : i32
    %c8_i32_54 = arith.constant 8 : i32
    %97 = arith.muli %96, %c8_i32_54 : i32
    %98 = tpu.assume_multiple %97, 8 : i32
    %99 = arith.index_cast %98 : i32 to index
    %c0_55 = arith.constant 0 : index
    %100 = vector.load %arg14[%99, %c0_55] : memref<64x64xf32, #tpu.memory_space<vmem>>, vector<8x64xf32>
    tpu.vector_store %arg14[%99, %c0_55], %95 {strides = array<i32>} : memref<64x64xf32, #tpu.memory_space<vmem>>, vector<8x64xf32>,
    %c5_i32 = arith.constant 5 : i32
    %101 = arith.truncf %89 : vector<8x64xf32> to vector<8x64xbf16>
    %102 = arith.truncf %95 : vector<8x64xf32> to vector<8x64xbf16>
    %103 = arith.index_cast %c5_i32 : i32 to index
    %c0_56 = arith.constant 0 : index
    %c0_57 = arith.constant 0 : index
    %104 = vector.load %arg13[%103, %c0_56, %c0_57] : memref<8x8x64xf32, #tpu.memory_space<vmem>>, vector<1x8x64xf32>
    %105 = vector.shape_cast %104 : vector<1x8x64xf32> to vector<8x64xf32>
    %cst_58 = arith.constant dense<0.000000e+00> : vector<8x64xf32>
    %106 = tpu.matmul %101, %0, %cst_58 {dimension_numbers = #tpu.dot_dimension_numbers<[1], [0], [0], [1], [0, 0, 1, 1], [], []>} : vector<8x64xbf16>, vector<64x64xbf16>, vector<8x64xf32> -> vector<8x64xf32>
    %107 = arith.addf %105, %106 : vector<8x64xf32>
    %108 = math.tanh %107 : vector<8x64xf32>
    %cst_59 = arith.constant dense<0.000000e+00> : vector<8x64xf32>
    %109 = tpu.matmul %101, %1, %cst_59 {dimension_numbers = #tpu.dot_dimension_numbers<[1], [0], [0], [1], [0, 0, 1, 1], [], []>} : vector<8x64xbf16>, vector<64x64xbf16>, vector<8x64xf32> -> vector<8x64xf32>
    %cst_60 = arith.constant dense<0.000000e+00> : vector<8x64xf32>
    %110 = tpu.matmul %102, %2, %cst_60 {dimension_numbers = #tpu.dot_dimension_numbers<[1], [0], [0], [1], [0, 0, 1, 1], [], []>} : vector<8x64xbf16>, vector<64x64xbf16>, vector<8x64xf32> -> vector<8x64xf32>
    %111 = arith.addf %109, %110 : vector<8x64xf32>
    %112 = vector.broadcast %3 : vector<1x64xf32> to vector<8x64xf32>
    %113 = arith.addf %111, %112 : vector<8x64xf32>
    %114 = math.tanh %113 : vector<8x64xf32>
    %c1_i32_61 = arith.constant 1 : i32
    %115 = arith.subi %c5_i32, %c1_i32_61 : i32
    %c8_i32_62 = arith.constant 8 : i32
    %116 = arith.muli %115, %c8_i32_62 : i32
    %117 = tpu.assume_multiple %116, 8 : i32
    %118 = arith.index_cast %117 : i32 to index
    %c0_63 = arith.constant 0 : index
    %119 = vector.load %arg14[%118, %c0_63] : memref<64x64xf32, #tpu.memory_space<vmem>>, vector<8x64xf32>
    tpu.vector_store %arg14[%118, %c0_63], %114 {strides = array<i32>} : memref<64x64xf32, #tpu.memory_space<vmem>>, vector<8x64xf32>,
    %c6_i32 = arith.constant 6 : i32
    %120 = arith.truncf %108 : vector<8x64xf32> to vector<8x64xbf16>
    %121 = arith.truncf %114 : vector<8x64xf32> to vector<8x64xbf16>
    %122 = arith.index_cast %c6_i32 : i32 to index
    %c0_64 = arith.constant 0 : index
    %c0_65 = arith.constant 0 : index
    %123 = vector.load %arg13[%122, %c0_64, %c0_65] : memref<8x8x64xf32, #tpu.memory_space<vmem>>, vector<1x8x64xf32>
    %124 = vector.shape_cast %123 : vector<1x8x64xf32> to vector<8x64xf32>
    %cst_66 = arith.constant dense<0.000000e+00> : vector<8x64xf32>
    %125 = tpu.matmul %120, %0, %cst_66 {dimension_numbers = #tpu.dot_dimension_numbers<[1], [0], [0], [1], [0, 0, 1, 1], [], []>} : vector<8x64xbf16>, vector<64x64xbf16>, vector<8x64xf32> -> vector<8x64xf32>
    %126 = arith.addf %124, %125 : vector<8x64xf32>
    %127 = math.tanh %126 : vector<8x64xf32>
    %cst_67 = arith.constant dense<0.000000e+00> : vector<8x64xf32>
    %128 = tpu.matmul %120, %1, %cst_67 {dimension_numbers = #tpu.dot_dimension_numbers<[1], [0], [0], [1], [0, 0, 1, 1], [], []>} : vector<8x64xbf16>, vector<64x64xbf16>, vector<8x64xf32> -> vector<8x64xf32>
    %cst_68 = arith.constant dense<0.000000e+00> : vector<8x64xf32>
    %129 = tpu.matmul %121, %2, %cst_68 {dimension_numbers = #tpu.dot_dimension_numbers<[1], [0], [0], [1], [0, 0, 1, 1], [], []>} : vector<8x64xbf16>, vector<64x64xbf16>, vector<8x64xf32> -> vector<8x64xf32>
    %130 = arith.addf %128, %129 : vector<8x64xf32>
    %131 = vector.broadcast %3 : vector<1x64xf32> to vector<8x64xf32>
    %132 = arith.addf %130, %131 : vector<8x64xf32>
    %133 = math.tanh %132 : vector<8x64xf32>
    %c1_i32_69 = arith.constant 1 : i32
    %134 = arith.subi %c6_i32, %c1_i32_69 : i32
    %c8_i32_70 = arith.constant 8 : i32
    %135 = arith.muli %134, %c8_i32_70 : i32
    %136 = tpu.assume_multiple %135, 8 : i32
    %137 = arith.index_cast %136 : i32 to index
    %c0_71 = arith.constant 0 : index
    %138 = vector.load %arg14[%137, %c0_71] : memref<64x64xf32, #tpu.memory_space<vmem>>, vector<8x64xf32>
    tpu.vector_store %arg14[%137, %c0_71], %133 {strides = array<i32>} : memref<64x64xf32, #tpu.memory_space<vmem>>, vector<8x64xf32>,
    %c7_i32 = arith.constant 7 : i32
    %139 = arith.truncf %127 : vector<8x64xf32> to vector<8x64xbf16>
    %140 = arith.truncf %133 : vector<8x64xf32> to vector<8x64xbf16>
    %141 = arith.index_cast %c7_i32 : i32 to index
    %c0_72 = arith.constant 0 : index
    %c0_73 = arith.constant 0 : index
    %142 = vector.load %arg13[%141, %c0_72, %c0_73] : memref<8x8x64xf32, #tpu.memory_space<vmem>>, vector<1x8x64xf32>
    %143 = vector.shape_cast %142 : vector<1x8x64xf32> to vector<8x64xf32>
    %cst_74 = arith.constant dense<0.000000e+00> : vector<8x64xf32>
    %144 = tpu.matmul %139, %0, %cst_74 {dimension_numbers = #tpu.dot_dimension_numbers<[1], [0], [0], [1], [0, 0, 1, 1], [], []>} : vector<8x64xbf16>, vector<64x64xbf16>, vector<8x64xf32> -> vector<8x64xf32>
    %145 = arith.addf %143, %144 : vector<8x64xf32>
    %146 = math.tanh %145 : vector<8x64xf32>
    %cst_75 = arith.constant dense<0.000000e+00> : vector<8x64xf32>
    %147 = tpu.matmul %139, %1, %cst_75 {dimension_numbers = #tpu.dot_dimension_numbers<[1], [0], [0], [1], [0, 0, 1, 1], [], []>} : vector<8x64xbf16>, vector<64x64xbf16>, vector<8x64xf32> -> vector<8x64xf32>
    %cst_76 = arith.constant dense<0.000000e+00> : vector<8x64xf32>
    %148 = tpu.matmul %140, %2, %cst_76 {dimension_numbers = #tpu.dot_dimension_numbers<[1], [0], [0], [1], [0, 0, 1, 1], [], []>} : vector<8x64xbf16>, vector<64x64xbf16>, vector<8x64xf32> -> vector<8x64xf32>
    %149 = arith.addf %147, %148 : vector<8x64xf32>
    %150 = vector.broadcast %3 : vector<1x64xf32> to vector<8x64xf32>
    %151 = arith.addf %149, %150 : vector<8x64xf32>
    %152 = math.tanh %151 : vector<8x64xf32>
    %c1_i32_77 = arith.constant 1 : i32
    %153 = arith.subi %c7_i32, %c1_i32_77 : i32
    %c8_i32_78 = arith.constant 8 : i32
    %154 = arith.muli %153, %c8_i32_78 : i32
    %155 = tpu.assume_multiple %154, 8 : i32
    %156 = arith.index_cast %155 : i32 to index
    %c0_79 = arith.constant 0 : index
    %157 = vector.load %arg14[%156, %c0_79] : memref<64x64xf32, #tpu.memory_space<vmem>>, vector<8x64xf32>
    tpu.vector_store %arg14[%156, %c0_79], %152 {strides = array<i32>} : memref<64x64xf32, #tpu.memory_space<vmem>>, vector<8x64xf32>,
    %c7_i32_80 = arith.constant 7 : i32
    %158 = arith.truncf %146 : vector<8x64xf32> to vector<8x64xbf16>
    %cst_81 = arith.constant dense<0.000000e+00> : vector<8x64xf32>
    %159 = tpu.matmul %158, %1, %cst_81 {dimension_numbers = #tpu.dot_dimension_numbers<[1], [0], [0], [1], [0, 0, 1, 1], [], []>} : vector<8x64xbf16>, vector<64x64xbf16>, vector<8x64xf32> -> vector<8x64xf32>
    %160 = arith.truncf %152 : vector<8x64xf32> to vector<8x64xbf16>
    %cst_82 = arith.constant dense<0.000000e+00> : vector<8x64xf32>
    %161 = tpu.matmul %160, %2, %cst_82 {dimension_numbers = #tpu.dot_dimension_numbers<[1], [0], [0], [1], [0, 0, 1, 1], [], []>} : vector<8x64xbf16>, vector<64x64xbf16>, vector<8x64xf32> -> vector<8x64xf32>
    %162 = arith.addf %159, %161 : vector<8x64xf32>
    %163 = vector.broadcast %3 : vector<1x64xf32> to vector<8x64xf32>
    %164 = arith.addf %162, %163 : vector<8x64xf32>
    %165 = math.tanh %164 : vector<8x64xf32>
    %c56 = arith.constant 56 : index
    %c0_83 = arith.constant 0 : index
    %166 = vector.load %arg14[%c56, %c0_83] : memref<64x64xf32, #tpu.memory_space<vmem>>, vector<8x64xf32>
    tpu.vector_store %arg14[%c56, %c0_83], %165 {strides = array<i32>} : memref<64x64xf32, #tpu.memory_space<vmem>>, vector<8x64xf32>,
    %c0_84 = arith.constant 0 : index
    %c0_85 = arith.constant 0 : index
    %c0_86 = arith.constant 0 : index
    %167 = vector.load %arg12[%c0_84, %c0_85, %c0_86] : memref<2x8x64xf32, #tpu.memory_space<vmem>>, vector<1x8x64xf32>
    %168 = vector.shape_cast %167 : vector<1x8x64xf32> to vector<8x64xf32>
    %169 = vector.shape_cast %146 : vector<8x64xf32> to vector<1x8x64xf32>
    tpu.vector_store %arg12[%c0_84, %c0_85, %c0_86], %169 {strides = array<i32>} : memref<2x8x64xf32, #tpu.memory_space<vmem>>, vector<1x8x64xf32>,
    %c1_87 = arith.constant 1 : index
    %c0_88 = arith.constant 0 : index
    %c0_89 = arith.constant 0 : index
    %170 = vector.load %arg12[%c1_87, %c0_88, %c0_89] : memref<2x8x64xf32, #tpu.memory_space<vmem>>, vector<1x8x64xf32>
    %171 = vector.shape_cast %170 : vector<1x8x64xf32> to vector<8x64xf32>
    %172 = vector.shape_cast %165 : vector<8x64xf32> to vector<1x8x64xf32>
    tpu.vector_store %arg12[%c1_87, %c0_88, %c0_89], %172 {strides = array<i32>} : memref<2x8x64xf32, #tpu.memory_space<vmem>>, vector<1x8x64xf32>,
    %c0_90 = arith.constant 0 : index
    %c0_91 = arith.constant 0 : index
    %173 = vector.load %arg14[%c0_90, %c0_91] : memref<64x64xf32, #tpu.memory_space<vmem>>, vector<64x64xf32>
    %c0_92 = arith.constant 0 : index
    %c0_93 = arith.constant 0 : index
    %174 = vector.load %arg9[%c0_92, %c0_93] : memref<1x64xf32, #tpu.memory_space<vmem>>, vector<1x64xf32>
    %cst_94 = arith.constant dense<0.000000e+00> : vector<1x64xf32>
    %175 = tpu.matmul %174, %173, %cst_94 {dimension_numbers = #tpu.dot_dimension_numbers<[1], [1], [0], [0], [0, 0, 1, 0], [], []>} : vector<1x64xf32>, vector<64x64xf32>, vector<1x64xf32> -> vector<1x64xf32>
    %c0_95 = arith.constant 0 : index
    %c0_96 = arith.constant 0 : index
    %176 = vector.load %arg10[%c0_95, %c0_96] : memref<1x1xf32, #tpu.memory_space<vmem>>, vector<1x1xf32>
    %177 = vector.broadcast %176 : vector<1x1xf32> to vector<1x64xf32>
    %178 = arith.addf %175, %177 : vector<1x64xf32>
    %c0_97 = arith.constant 0 : index
    %c0_98 = arith.constant 0 : index
    %c0_99 = arith.constant 0 : index
    %179 = vector.load %arg11[%c0_97, %c0_98, %c0_99] : memref<1x1x64xf32, #tpu.memory_space<vmem>>, vector<1x1x64xf32>
    %180 = vector.shape_cast %179 : vector<1x1x64xf32> to vector<1x64xf32>
    %181 = vector.shape_cast %178 : vector<1x64xf32> to vector<1x1x64xf32>
    tpu.vector_store %arg11[%c0_97, %c0_98, %c0_99], %181 {strides = array<i32>} : memref<1x1x64xf32, #tpu.memory_space<vmem>>, vector<1x1x64xf32>,
    return
  }
  func.func @transform_0(%arg0: i32) -> (i32, i32, i32) {
    %c0_i32 = arith.constant 0 : i32
    %c0_i32_0 = arith.constant 0 : i32
    %c0_i32_1 = arith.constant 0 : i32
    return %c0_i32, %arg0, %c0_i32_0 : i32, i32, i32
  }
  func.func @transform_1(%arg0: i32) -> (i32, i32, i32) {
    %c0_i32 = arith.constant 0 : i32
    %c0_i32_0 = arith.constant 0 : i32
    %c0_i32_1 = arith.constant 0 : i32
    return %c0_i32, %arg0, %c0_i32_0 : i32, i32, i32
  }
  func.func @transform_2(%arg0: i32) -> (i32, i32) {
    %c0_i32 = arith.constant 0 : i32
    %c0_i32_0 = arith.constant 0 : i32
    %c0_i32_1 = arith.constant 0 : i32
    return %c0_i32, %c0_i32_0 : i32, i32
  }
  func.func @transform_3(%arg0: i32) -> (i32, i32) {
    %c0_i32 = arith.constant 0 : i32
    %c0_i32_0 = arith.constant 0 : i32
    %c0_i32_1 = arith.constant 0 : i32
    return %c0_i32, %c0_i32_0 : i32, i32
  }
  func.func @transform_4(%arg0: i32) -> (i32, i32) {
    %c0_i32 = arith.constant 0 : i32
    %c0_i32_0 = arith.constant 0 : i32
    %c0_i32_1 = arith.constant 0 : i32
    return %c0_i32, %c0_i32_0 : i32, i32
  }
  func.func @transform_5(%arg0: i32) -> (i32, i32) {
    %c0_i32 = arith.constant 0 : i32
    %c0_i32_0 = arith.constant 0 : i32
    %c0_i32_1 = arith.constant 0 : i32
    return %c0_i32, %c0_i32_0 : i32, i32
  }
  func.func @transform_6(%arg0: i32) -> (i32, i32) {
    %c0_i32 = arith.constant 0 : i32
    %c0_i32_0 = arith.constant 0 : i32
    %c0_i32_1 = arith.constant 0 : i32
    return %c0_i32, %c0_i32_0 : i32, i32
  }
  func.func @transform_7(%arg0: i32) -> (i32, i32) {
    %c0_i32 = arith.constant 0 : i32
    %c0_i32_0 = arith.constant 0 : i32
    %c0_i32_1 = arith.constant 0 : i32
    return %c0_i32, %c0_i32_0 : i32, i32
  }
  func.func @transform_8(%arg0: i32) -> (i32, i32) {
    %c0_i32 = arith.constant 0 : i32
    %c0_i32_0 = arith.constant 0 : i32
    %c0_i32_1 = arith.constant 0 : i32
    return %c0_i32, %c0_i32_0 : i32, i32
  }
  func.func @transform_9(%arg0: i32) -> (i32, i32) {
    %c0_i32 = arith.constant 0 : i32
    %c0_i32_0 = arith.constant 0 : i32
    %c0_i32_1 = arith.constant 0 : i32
    return %c0_i32, %c0_i32_0 : i32, i32
  }
  func.func @transform_10(%arg0: i32) -> (i32, i32, i32) {
    %c0_i32 = arith.constant 0 : i32
    %c0_i32_0 = arith.constant 0 : i32
    %c0_i32_1 = arith.constant 0 : i32
    return %arg0, %c0_i32, %c0_i32_0 : i32, i32, i32
  }
  func.func @transform_11(%arg0: i32) -> (i32, i32, i32) {
    %c0_i32 = arith.constant 0 : i32
    %c0_i32_0 = arith.constant 0 : i32
    %c0_i32_1 = arith.constant 0 : i32
    return %c0_i32, %arg0, %c0_i32_0 : i32, i32, i32
  }
}

</mosaic_0001>

<llo_original>
// kernel: tpu_custom_call.1
$region0: #{tpu_custom_call.1}
  #allocation0 [shape = 'u32[]', space=smem, size = 0x4, offset = 0x4, fixed_abs, tag = 'smem constant byte address 0x4 - core index']
  #allocation1 [shape = 'u32[144,128]{1,0:T(1,128)}', space=vmem, size = 0x12000, scoped, tag = 'internal scratch']
  #allocation2 [shape = 'f32[8,8,64]{2,1,0:T(8,128)}', space=vmem, size = 0x8000, scoped, tag = 'scratch operand']
  #allocation3 [shape = 'f32[64,64]{1,0:T(8,128)}', space=vmem, size = 0x8000, scoped, tag = 'scratch operand']
  #allocation4 [shape = 'f32[1,1]{1,0:T(1,128)S(1)}', space=vmem, size = 0x200, scoped, tag = 'scoped memory for tpu_custom_call.1']
  %s0 = inlined_call_operand.vmem [shape: f32[8,8,1], index: 0, kind: input, shape index: {}]
  %s1 = inlined_call_operand.hbm [shape: f32[2,8,64], index: 1, kind: input, shape index: {}]
  %s2 = inlined_call_operand.vmem [shape: f32[1,64], index: 2, kind: input, shape index: {}]
  %s3 = inlined_call_operand.vmem [shape: bf16[64,64], index: 3, kind: input, shape index: {}]
  %s4 = inlined_call_operand.vmem [shape: f32[1,64], index: 4, kind: input, shape index: {}]
  %s5 = inlined_call_operand.vmem [shape: bf16[64,64], index: 5, kind: input, shape index: {}]
  %s6 = inlined_call_operand.vmem [shape: bf16[64,64], index: 6, kind: input, shape index: {}]
  %s7 = inlined_call_operand.vmem [shape: f32[1,64], index: 7, kind: input, shape index: {}]
  %s8 = inlined_call_operand.vmem [shape: f32[1,64], index: 8, kind: input, shape index: {}]
  %s9 = inlined_call_operand.<no memory space> [shape: f32[1,1], index: 9, kind: input, shape index: {}]
  %s10 = inlined_call_operand.hbm [shape: f32[1,1,64], index: 10, kind: output, shape index: {0}]
  %s11 = inlined_call_operand.hbm [shape: f32[2,8,64], index: 11, kind: output, shape index: {1}]
  %12 = xla_tuple %s10, %s11
  %s13 = sld [smem:[#allocation0]]
  $region62: #{tpu_custom_call.1} parent=0
    _
  %s15 = ssub.s32 1, %s13
  %s16 = scalar_select 0, %s15, %s13
  %v17 = vstv %s9
  %18 = vst [vmem:[#allocation4] sm:$0x1] %v17
  $region1: #{tpu_custom_call.1} parent=0
    #allocation5 [shape = 'u8[8192]{0}', space=vmem, size = 0x2000, scoped, tag = 'input window, operand 1, single buffered']
    #allocation6 [shape = 's32[1]{0}', space=sflag, size = 0x4, scoped, tag = 'scoped memory for tpu_custom_call.1']
    #allocation7 [shape = 's32[1]{0}', space=sflag, size = 0x4, scoped, tag = 'scoped memory for tpu_custom_call.1']
    #allocation8 [shape = 'u8[512]{0}', space=vmem, size = 0x400, scoped, tag = 'output window, operand 0, single buffered']
    #allocation9 [shape = 'u8[8192]{0}', space=vmem, size = 0x2000, scoped, tag = 'output window, operand 1, single buffered']
    #allocation10 [shape = 's32[1]{0}', space=sflag, size = 0x4, scoped, tag = 'scoped memory for tpu_custom_call.1']
    %19 = vsyncpa [#allocation6], 0
    %20 = vsyncpa [#allocation7], 0
    %21 = vsyncpa [#allocation10], 0
    // Predicated region
    $region2: #{tpu_custom_call.1} parent=1 // pred_check
      _
    $region3: #{tpu_custom_call.1} parent=1 // pred_check_branch
      %23 = sbr.rel (0) target = $region5
    $region4: #{tpu_custom_call.1} parent=1 // pred_region
      _
    $region5: #{tpu_custom_call.1} parent=1 // pred_fallthru
      _
    // Predicated region
    $region6: #{tpu_custom_call.1} parent=1 // pred_check
      _
    $region7: #{tpu_custom_call.1} parent=1 // pred_check_branch
      %25 = sbr.rel (0) target = $region9
    $region8: #{tpu_custom_call.1} parent=1 // pred_region
      %s27 = ssub.s32 256, 256
      %28 = vsyncadd [#allocation6], %s27
      %s29 = sshll.u32 [#allocation5], 4
      %s30 = int_to_ptr.vmem [resolvable:$true] %s29
      %35 = dma.hbm_to_vmem [thread:$0]  %s1, 256, %s30, [#allocation6], 128, 128, 8
    $region9: #{tpu_custom_call.1} parent=1 // pred_fallthru
      _
    // Predicated region
    $region10: #{tpu_custom_call.1} parent=1 // pred_check
      _
    $region11: #{tpu_custom_call.1} parent=1 // pred_check_branch
      %37 = sbr.rel (0) target = $region13
    $region12: #{tpu_custom_call.1} parent=1 // pred_region
      _
    $region13: #{tpu_custom_call.1} parent=1 // pred_fallthru
      _
    // Predicated region
    $region14: #{tpu_custom_call.1} parent=1 // pred_check
      _
    $region15: #{tpu_custom_call.1} parent=1 // pred_check_branch
      %39 = sbr.rel (0) target = $region17
    $region16: #{tpu_custom_call.1} parent=1 // pred_region
      _
    $region17: #{tpu_custom_call.1} parent=1 // pred_fallthru
      _
    // Predicated region
    $region18: #{tpu_custom_call.1} parent=1 // pred_check
      _
    $region19: #{tpu_custom_call.1} parent=1 // pred_check_branch
      %41 = sbr.rel (0) target = $region21
    $region20: #{tpu_custom_call.1} parent=1 // pred_region
      _
    $region21: #{tpu_custom_call.1} parent=1 // pred_fallthru
      _
    // Predicated region
    $region22: #{tpu_custom_call.1} parent=1 // pred_check
      _
    $region23: #{tpu_custom_call.1} parent=1 // pred_check_branch
      %43 = sbr.rel (0) target = $region25
    $region24: #{tpu_custom_call.1} parent=1 // pred_region
      _
    $region25: #{tpu_custom_call.1} parent=1 // pred_fallthru
      _
    // Predicated region
    $region26: #{tpu_custom_call.1} parent=1 // pred_check
      _
    $region27: #{tpu_custom_call.1} parent=1 // pred_check_branch
      %45 = sbr.rel (0) target = $region29
    $region28: #{tpu_custom_call.1} parent=1 // pred_region
      _
    $region29: #{tpu_custom_call.1} parent=1 // pred_fallthru
      _
    // Predicated region
    $region30: #{tpu_custom_call.1} parent=1 // pred_check
      _
    $region31: #{tpu_custom_call.1} parent=1 // pred_check_branch
      %47 = sbr.rel (0) target = $region33
    $region32: #{tpu_custom_call.1} parent=1 // pred_region
      _
    $region33: #{tpu_custom_call.1} parent=1 // pred_fallthru
      _
    // Predicated region
    $region34: #{tpu_custom_call.1} parent=1 // pred_check
      _
    $region35: #{tpu_custom_call.1} parent=1 // pred_check_branch
      %49 = sbr.rel (0) target = $region37
    $region36: #{tpu_custom_call.1} parent=1 // pred_region
      _
    $region37: #{tpu_custom_call.1} parent=1 // pred_fallthru
      _
    // Predicated region
    $region38: #{tpu_custom_call.1} parent=1 // pred_check
      _
    $region39: #{tpu_custom_call.1} parent=1 // pred_check_branch
      %51 = sbr.rel (0) target = $region41
    $region40: #{tpu_custom_call.1} parent=1 // pred_region
      _
    $region41: #{tpu_custom_call.1} parent=1 // pred_fallthru
      _
    // Predicated region
    $region42: #{tpu_custom_call.1} parent=1 // pred_check
      _
    $region43: #{tpu_custom_call.1} parent=1 // pred_check_branch
      %53 = sbr.rel (0) target = $region45
    $region44: #{tpu_custom_call.1} parent=1 // pred_region
      %54 = dma.done [#allocation6], 256
    $region45: #{tpu_custom_call.1} parent=1 // pred_fallthru
      _
    %v56 = vld [vmem:[%s3] sm:$0xf]
    %v57 = vld [vmem:[%s3 + $0x4] sm:$0xf]
    %v58 = vld [vmem:[%s3 + $0x8] sm:$0xf]
    %v59 = vld [vmem:[%s3 + $0xc] sm:$0xf]
    %v60 = vld [vmem:[%s3 + $0x10] sm:$0xf]
    %v61 = vld [vmem:[%s3 + $0x14] sm:$0xf]
    %v62 = vld [vmem:[%s3 + $0x18] sm:$0xf]
    %v63 = vld [vmem:[%s3 + $0x1c] sm:$0xf]
    %v64 = vld [vmem:[%s5] sm:$0xf]
    %v65 = vld [vmem:[%s5 + $0x4] sm:$0xf]
    %v66 = vld [vmem:[%s5 + $0x8] sm:$0xf]
    %v67 = vld [vmem:[%s5 + $0xc] sm:$0xf]
    %v68 = vld [vmem:[%s5 + $0x10] sm:$0xf]
    %v69 = vld [vmem:[%s5 + $0x14] sm:$0xf]
    %v70 = vld [vmem:[%s5 + $0x18] sm:$0xf]
    %v71 = vld [vmem:[%s5 + $0x1c] sm:$0xf]
    %v72 = vld [vmem:[%s6] sm:$0xf]
    %v73 = vld [vmem:[%s6 + $0x4] sm:$0xf]
    %v74 = vld [vmem:[%s6 + $0x8] sm:$0xf]
    %v75 = vld [vmem:[%s6 + $0xc] sm:$0xf]
    %v76 = vld [vmem:[%s6 + $0x10] sm:$0xf]
    %v77 = vld [vmem:[%s6 + $0x14] sm:$0xf]
    %v78 = vld [vmem:[%s6 + $0x18] sm:$0xf]
    %v79 = vld [vmem:[%s6 + $0x1c] sm:$0xf]
    %v80 = vld [vmem:[%s7] sm:$0x1]
    %v81 = vld [vmem:[%s0] sm:$0xff]
    %v82 = vld [vmem:[%s0 + $0x8] sm:$0xff]
    %v83 = vld [vmem:[%s0 + $0x10] sm:$0xff]
    %v84 = vld [vmem:[%s0 + $0x18] sm:$0xff]
    %v85 = vld [vmem:[%s0 + $0x20] sm:$0xff]
    %v86 = vld [vmem:[%s0 + $0x28] sm:$0xff]
    %v87 = vld [vmem:[%s0 + $0x30] sm:$0xff]
    %v88 = vld [vmem:[%s0 + $0x38] sm:$0xff]
    %v89 = vld [vmem:[%s2] sm:$0x1]
    %91 = vset.pattern.permute.xlu0 0
    %92 = vperm.xlu0 %91, %v81
    %v93 = vpop.permute.xlu0 %92
    %96 = vset.pattern.permute.xlu0 0
    %97 = vperm.xlu0 %96, %v82
    %v98 = vpop.permute.xlu0 %97
    %101 = vset.pattern.permute.xlu0 0
    %102 = vperm.xlu0 %101, %v83
    %v103 = vpop.permute.xlu0 %102
    %106 = vset.pattern.permute.xlu0 0
    %107 = vperm.xlu0 %106, %v84
    %v108 = vpop.permute.xlu0 %107
    %111 = vset.pattern.permute.xlu0 0
    %112 = vperm.xlu0 %111, %v85
    %v113 = vpop.permute.xlu0 %112
    %116 = vset.pattern.permute.xlu0 0
    %117 = vperm.xlu0 %116, %v86
    %v118 = vpop.permute.xlu0 %117
    %121 = vset.pattern.permute.xlu0 0
    %122 = vperm.xlu0 %121, %v87
    %v123 = vpop.permute.xlu0 %122
    %126 = vset.pattern.permute.xlu0 0
    %127 = vperm.xlu0 %126, %v88
    %v128 = vpop.permute.xlu0 %127
    %v131 = vlaneseq
    %v132 = vshrl.u32 %v131, 7
    %v133 = vsub.s32 0, %v132
    %v134 = vrot.slane %v89, %v133
    %v136 = vmul.f32 %v93, %v134
    %v137 = vmul.f32 %v98, %v134
    %v138 = vmul.f32 %v103, %v134
    %v139 = vmul.f32 %v108, %v134
    %v140 = vmul.f32 %v113, %v134
    %v141 = vmul.f32 %v118, %v134
    %v142 = vmul.f32 %v123, %v134
    %v143 = vmul.f32 %v128, %v134
    %v144 = vld [vmem:[%s4] sm:$0x1]
    %v146 = vlaneseq
    %v147 = vshrl.u32 %v146, 7
    %v148 = vsub.s32 0, %v147
    %v149 = vrot.slane %v144, %v148
    %v151 = vadd.f32 %v136, %v149
    %v152 = vadd.f32 %v137, %v149
    %v153 = vadd.f32 %v138, %v149
    %v154 = vadd.f32 %v139, %v149
    %v155 = vadd.f32 %v140, %v149
    %v156 = vadd.f32 %v141, %v149
    %v157 = vadd.f32 %v142, %v149
    %v158 = vadd.f32 %v143, %v149
    %vm159 = vcmask 523264
    %160 = vst.msk [vmem:[#allocation2] sm:$0xff] %vm159, %v151
    %161 = vst.msk [vmem:[#allocation2 + $0x8] sm:$0xff] %vm159, %v152
    %162 = vst.msk [vmem:[#allocation2 + $0x10] sm:$0xff] %vm159, %v153
    %163 = vst.msk [vmem:[#allocation2 + $0x18] sm:$0xff] %vm159, %v154
    %164 = vst.msk [vmem:[#allocation2 + $0x20] sm:$0xff] %vm159, %v155
    %165 = vst.msk [vmem:[#allocation2 + $0x28] sm:$0xff] %vm159, %v156
    %166 = vst.msk [vmem:[#allocation2 + $0x30] sm:$0xff] %vm159, %v157
    %167 = vst.msk [vmem:[#allocation2 + $0x38] sm:$0xff] %vm159, %v158
    %v168 = vld [vmem:[#allocation2] sm:$0xff]
    %v169 = vld [vmem:[#allocation5] sm:$0xff]
    %v170 = vpack.c.bf16 %v169, %v169
    %v179 = vunpack.c.l.b16 %v56
    %v180 = vunpack.c.l.b16 %v57
    %v181 = vunpack.c.l.b16 %v58
    %v182 = vunpack.c.l.b16 %v59
    %v183 = vunpack.c.l.b16 %v60
    %v184 = vunpack.c.l.b16 %v61
    %v185 = vunpack.c.l.b16 %v62
    %v186 = vunpack.c.l.b16 %v63
    %v187 = vpack.c.b16 %v180, %v179
    %v188 = vpack.c.b16 %v182, %v181
    %v189 = vpack.c.b16 %v184, %v183
    %v190 = vpack.c.b16 %v186, %v185
    %v196 = vsel %vm159, %v170, 0
    %198 = vmatprep.subr.bf16.mxu0 0
    %199 = vmatpush1.bf16.msra.mxu0 %v187
    %200 = vmatprep.subr.bf16.mxu0 0
    %201 = vmatpush1.bf16.msra.mxu0 %v188
    %202 = vmatprep.subr.bf16.mxu0 0
    %203 = vmatpush1.bf16.msra.mxu0 %v189
    %204 = vmatprep.subr.bf16.mxu0 0
    %205 = vmatpush1.bf16.msra.mxu0 %v190
    %206 = vmatprep.subr.bf16.mxu0 0
    %207 = vmatpush1.bf16.msra.mxu0 0
    %208 = vmatprep.subr.bf16.mxu0 0
    %209 = vmatpush1.bf16.msra.mxu0 0
    %210 = vmatprep.subr.bf16.mxu0 0
    %211 = vmatpush1.bf16.msra.mxu0 0
    %212 = vmatprep.subr.bf16.mxu0 0
    %213 = vmatpush1.bf16.msra.mxu0 0
    %214 = vmatprep.subr.bf16.mxu0 0
    %215 = vmatpush1.bf16.msra.mxu0 0
    %216 = vmatprep.subr.bf16.mxu0 0
    %217 = vmatpush1.bf16.msra.mxu0 0
    %218 = vmatprep.subr.bf16.mxu0 0
    %219 = vmatpush1.bf16.msra.mxu0 0
    %220 = vmatprep.subr.bf16.mxu0 0
    %221 = vmatpush1.bf16.msra.mxu0 0
    %222 = vmatprep.subr.bf16.mxu0 0
    %223 = vmatpush1.bf16.msra.mxu0 0
    %224 = vmatprep.subr.bf16.mxu0 0
    %225 = vmatpush1.bf16.msra.mxu0 0
    %226 = vmatprep.subr.bf16.mxu0 0
    %227 = vmatpush1.bf16.msra.mxu0 0
    %228 = vmatprep.subr.bf16.mxu0 0
    %229 = vmatpush1.bf16.msra.mxu0 0
    %230 = vmatprep.mubr.bf16.mxu0 0
    %231 = vmatmul.mubr.bf16.gmra.mrb[0].mxu0 %v196
    %v232 = vpop.f32.mrb[0].mxu0
    %v233 = vadd.f32 0.0, %v232
    %v234 = vpop.f32.mrb[0].mxu0
    %v235 = vpop.f32.mrb[0].mxu0
    %v236 = vpop.f32.mrb[0].mxu0
    %237 = vdwg.mxu0
    %v238 = vadd.f32 %v168, %v233
    %v239 = vtanh.pop %v238
    %s240 = scalar_lea.vmem [#allocation5], 8
    %v241 = vld [vmem:[%s240] sm:$0xff]
    %v242 = vpack.c.bf16 %v239, %v239
    %v243 = vpack.c.bf16 %v241, %v241
    %s244 = scalar_lea.vmem [#allocation2], 8
    %v245 = vld [vmem:[%s244] sm:$0xff]
    %v247 = vsel %vm159, %v242, 0
    %249 = vmatprep.subr.bf16.mxu0 0
    %250 = vmatpush1.bf16.msra.mxu0 %v187
    %251 = vmatprep.subr.bf16.mxu0 0
    %252 = vmatpush1.bf16.msra.mxu0 %v188
    %253 = vmatprep.subr.bf16.mxu0 0
    %254 = vmatpush1.bf16.msra.mxu0 %v189
    %255 = vmatprep.subr.bf16.mxu0 0
    %256 = vmatpush1.bf16.msra.mxu0 %v190
    %257 = vmatprep.subr.bf16.mxu0 0
    %258 = vmatpush1.bf16.msra.mxu0 0
    %259 = vmatprep.subr.bf16.mxu0 0
    %260 = vmatpush1.bf16.msra.mxu0 0
    %261 = vmatprep.subr.bf16.mxu0 0
    %262 = vmatpush1.bf16.msra.mxu0 0
    %263 = vmatprep.subr.bf16.mxu0 0
    %264 = vmatpush1.bf16.msra.mxu0 0
    %265 = vmatprep.subr.bf16.mxu0 0
    %266 = vmatpush1.bf16.msra.mxu0 0
    %267 = vmatprep.subr.bf16.mxu0 0
    %268 = vmatpush1.bf16.msra.mxu0 0
    %269 = vmatprep.subr.bf16.mxu0 0
    %270 = vmatpush1.bf16.msra.mxu0 0
    %271 = vmatprep.subr.bf16.mxu0 0
    %272 = vmatpush1.bf16.msra.mxu0 0
    %273 = vmatprep.subr.bf16.mxu0 0
    %274 = vmatpush1.bf16.msra.mxu0 0
    %275 = vmatprep.subr.bf16.mxu0 0
    %276 = vmatpush1.bf16.msra.mxu0 0
    %277 = vmatprep.subr.bf16.mxu0 0
    %278 = vmatpush1.bf16.msra.mxu0 0
    %279 = vmatprep.subr.bf16.mxu0 0
    %280 = vmatpush1.bf16.msra.mxu0 0
    %281 = vmatprep.mubr.bf16.mxu0 0
    %282 = vmatmul.mubr.bf16.gmra.mrb[0].mxu0 %v247
    %v283 = vpop.f32.mrb[0].mxu0
    %v284 = vadd.f32 0.0, %v283
    %v285 = vpop.f32.mrb[0].mxu0
    %v286 = vpop.f32.mrb[0].mxu0
    %v287 = vpop.f32.mrb[0].mxu0
    %288 = vdwg.mxu0
    %v289 = vadd.f32 %v245, %v284
    %v290 = vtanh.pop %v289
    %v299 = vunpack.c.l.b16 %v72
    %v300 = vunpack.c.l.b16 %v73
    %v301 = vunpack.c.l.b16 %v74
    %v302 = vunpack.c.l.b16 %v75
    %v303 = vunpack.c.l.b16 %v76
    %v304 = vunpack.c.l.b16 %v77
    %v305 = vunpack.c.l.b16 %v78
    %v306 = vunpack.c.l.b16 %v79
    %v307 = vpack.c.b16 %v300, %v299
    %v308 = vpack.c.b16 %v302, %v301
    %v309 = vpack.c.b16 %v304, %v303
    %v310 = vpack.c.b16 %v306, %v305
    %v316 = vsel %vm159, %v243, 0
    %318 = vmatprep.subr.bf16.mxu0 0
    %319 = vmatpush1.bf16.msra.mxu0 %v307
    %320 = vmatprep.subr.bf16.mxu0 0
    %321 = vmatpush1.bf16.msra.mxu0 %v308
    %322 = vmatprep.subr.bf16.mxu0 0
    %323 = vmatpush1.bf16.msra.mxu0 %v309
    %324 = vmatprep.subr.bf16.mxu0 0
    %325 = vmatpush1.bf16.msra.mxu0 %v310
    %326 = vmatprep.subr.bf16.mxu0 0
    %327 = vmatpush1.bf16.msra.mxu0 0
    %328 = vmatprep.subr.bf16.mxu0 0
    %329 = vmatpush1.bf16.msra.mxu0 0
    %330 = vmatprep.subr.bf16.mxu0 0
    %331 = vmatpush1.bf16.msra.mxu0 0
    %332 = vmatprep.subr.bf16.mxu0 0
    %333 = vmatpush1.bf16.msra.mxu0 0
    %334 = vmatprep.subr.bf16.mxu0 0
    %335 = vmatpush1.bf16.msra.mxu0 0
    %336 = vmatprep.subr.bf16.mxu0 0
    %337 = vmatpush1.bf16.msra.mxu0 0
    %338 = vmatprep.subr.bf16.mxu0 0
    %339 = vmatpush1.bf16.msra.mxu0 0
    %340 = vmatprep.subr.bf16.mxu0 0
    %341 = vmatpush1.bf16.msra.mxu0 0
    %342 = vmatprep.subr.bf16.mxu0 0
    %343 = vmatpush1.bf16.msra.mxu0 0
    %344 = vmatprep.subr.bf16.mxu0 0
    %345 = vmatpush1.bf16.msra.mxu0 0
    %346 = vmatprep.subr.bf16.mxu0 0
    %347 = vmatpush1.bf16.msra.mxu0 0
    %348 = vmatprep.subr.bf16.mxu0 0
    %349 = vmatpush1.bf16.msra.mxu0 0
    %350 = vmatprep.mubr.bf16.mxu0 0
    %351 = vmatmul.mubr.bf16.gmra.mrb[0].mxu0 %v316
    %v352 = vpop.f32.mrb[0].mxu0
    %v353 = vadd.f32 0.0, %v352
    %v354 = vpop.f32.mrb[0].mxu0
    %v355 = vpop.f32.mrb[0].mxu0
    %v356 = vpop.f32.mrb[0].mxu0
    %357 = vdwg.mxu0
    %v366 = vunpack.c.l.b16 %v64
    %v367 = vunpack.c.l.b16 %v65
    %v368 = vunpack.c.l.b16 %v66
    %v369 = vunpack.c.l.b16 %v67
    %v370 = vunpack.c.l.b16 %v68
    %v371 = vunpack.c.l.b16 %v69
    %v372 = vunpack.c.l.b16 %v70
    %v373 = vunpack.c.l.b16 %v71
    %v374 = vpack.c.b16 %v367, %v366
    %v375 = vpack.c.b16 %v369, %v368
    %v376 = vpack.c.b16 %v371, %v370
    %v377 = vpack.c.b16 %v373, %v372
    %382 = vmatprep.subr.bf16.mxu0 0
    %383 = vmatpush1.bf16.msra.mxu0 %v374
    %384 = vmatprep.subr.bf16.mxu0 0
    %385 = vmatpush1.bf16.msra.mxu0 %v375
    %386 = vmatprep.subr.bf16.mxu0 0
    %387 = vmatpush1.bf16.msra.mxu0 %v376
    %388 = vmatprep.subr.bf16.mxu0 0
    %389 = vmatpush1.bf16.msra.mxu0 %v377
    %390 = vmatprep.subr.bf16.mxu0 0
    %391 = vmatpush1.bf16.msra.mxu0 0
    %392 = vmatprep.subr.bf16.mxu0 0
    %393 = vmatpush1.bf16.msra.mxu0 0
    %394 = vmatprep.subr.bf16.mxu0 0
    %395 = vmatpush1.bf16.msra.mxu0 0
    %396 = vmatprep.subr.bf16.mxu0 0
    %397 = vmatpush1.bf16.msra.mxu0 0
    %398 = vmatprep.subr.bf16.mxu0 0
    %399 = vmatpush1.bf16.msra.mxu0 0
    %400 = vmatprep.subr.bf16.mxu0 0
    %401 = vmatpush1.bf16.msra.mxu0 0
    %402 = vmatprep.subr.bf16.mxu0 0
    %403 = vmatpush1.bf16.msra.mxu0 0
    %404 = vmatprep.subr.bf16.mxu0 0
    %405 = vmatpush1.bf16.msra.mxu0 0
    %406 = vmatprep.subr.bf16.mxu0 0
    %407 = vmatpush1.bf16.msra.mxu0 0
    %408 = vmatprep.subr.bf16.mxu0 0
    %409 = vmatpush1.bf16.msra.mxu0 0
    %410 = vmatprep.subr.bf16.mxu0 0
    %411 = vmatpush1.bf16.msra.mxu0 0
    %412 = vmatprep.subr.bf16.mxu0 0
    %413 = vmatpush1.bf16.msra.mxu0 0
    %414 = vmatprep.mubr.bf16.mxu0 0
    %415 = vmatmul.mubr.bf16.gmra.mrb[0].mxu0 %v247
    %v416 = vpop.f32.mrb[0].mxu0
    %v417 = vadd.f32 %v353, %v416
    %v418 = vpop.f32.mrb[0].mxu0
    %v419 = vpop.f32.mrb[0].mxu0
    %v420 = vpop.f32.mrb[0].mxu0
    %421 = vdwg.mxu0
    %v423 = vlaneseq
    %v424 = vshrl.u32 %v423, 7
    %v425 = vsub.s32 0, %v424
    %v426 = vrot.slane %v80, %v425
    %v428 = vadd.f32 %v417, %v426
    %v429 = vtanh.pop %v428
    %430 = vst.msk [vmem:[#allocation3] sm:$0xff] %vm159, %v429
    %v431 = vpack.c.bf16 %v290, %v290
    %v432 = vpack.c.bf16 %v429, %v429
    %s433 = scalar_lea.vmem [#allocation2], 16
    %v434 = vld [vmem:[%s433] sm:$0xff]
    %v436 = vsel %vm159, %v431, 0
    %438 = vmatprep.subr.bf16.mxu0 0
    %439 = vmatpush1.bf16.msra.mxu0 %v187
    %440 = vmatprep.subr.bf16.mxu0 0
    %441 = vmatpush1.bf16.msra.mxu0 %v188
    %442 = vmatprep.subr.bf16.mxu0 0
    %443 = vmatpush1.bf16.msra.mxu0 %v189
    %444 = vmatprep.subr.bf16.mxu0 0
    %445 = vmatpush1.bf16.msra.mxu0 %v190
    %446 = vmatprep.subr.bf16.mxu0 0
    %447 = vmatpush1.bf16.msra.mxu0 0
    %448 = vmatprep.subr.bf16.mxu0 0
    %449 = vmatpush1.bf16.msra.mxu0 0
    %450 = vmatprep.subr.bf16.mxu0 0
    %451 = vmatpush1.bf16.msra.mxu0 0
    %452 = vmatprep.subr.bf16.mxu0 0
    %453 = vmatpush1.bf16.msra.mxu0 0
    %454 = vmatprep.subr.bf16.mxu0 0
    %455 = vmatpush1.bf16.msra.mxu0 0
    %456 = vmatprep.subr.bf16.mxu0 0
    %457 = vmatpush1.bf16.msra.mxu0 0
    %458 = vmatprep.subr.bf16.mxu0 0
    %459 = vmatpush1.bf16.msra.mxu0 0
    %460 = vmatprep.subr.bf16.mxu0 0
    %461 = vmatpush1.bf16.msra.mxu0 0
    %462 = vmatprep.subr.bf16.mxu0 0
    %463 = vmatpush1.bf16.msra.mxu0 0
    %464 = vmatprep.subr.bf16.mxu0 0
    %465 = vmatpush1.bf16.msra.mxu0 0
    %466 = vmatprep.subr.bf16.mxu0 0
    %467 = vmatpush1.bf16.msra.mxu0 0
    %468 = vmatprep.subr.bf16.mxu0 0
    %469 = vmatpush1.bf16.msra.mxu0 0
    %470 = vmatprep.mubr.bf16.mxu0 0
    %471 = vmatmul.mubr.bf16.gmra.mrb[0].mxu0 %v436
    %v472 = vpop.f32.mrb[0].mxu0
    %v473 = vadd.f32 0.0, %v472
    %v474 = vpop.f32.mrb[0].mxu0
    %v475 = vpop.f32.mrb[0].mxu0
    %v476 = vpop.f32.mrb[0].mxu0
    %477 = vdwg.mxu0
    %v478 = vadd.f32 %v434, %v473
    %v479 = vtanh.pop %v478
    %v481 = vsel %vm159, %v432, 0
    %483 = vmatprep.subr.bf16.mxu0 0
    %484 = vmatpush1.bf16.msra.mxu0 %v307
    %485 = vmatprep.subr.bf16.mxu0 0
    %486 = vmatpush1.bf16.msra.mxu0 %v308
    %487 = vmatprep.subr.bf16.mxu0 0
    %488 = vmatpush1.bf16.msra.mxu0 %v309
    %489 = vmatprep.subr.bf16.mxu0 0
    %490 = vmatpush1.bf16.msra.mxu0 %v310
    %491 = vmatprep.subr.bf16.mxu0 0
    %492 = vmatpush1.bf16.msra.mxu0 0
    %493 = vmatprep.subr.bf16.mxu0 0
    %494 = vmatpush1.bf16.msra.mxu0 0
    %495 = vmatprep.subr.bf16.mxu0 0
    %496 = vmatpush1.bf16.msra.mxu0 0
    %497 = vmatprep.subr.bf16.mxu0 0
    %498 = vmatpush1.bf16.msra.mxu0 0
    %499 = vmatprep.subr.bf16.mxu0 0
    %500 = vmatpush1.bf16.msra.mxu0 0
    %501 = vmatprep.subr.bf16.mxu0 0
    %502 = vmatpush1.bf16.msra.mxu0 0
    %503 = vmatprep.subr.bf16.mxu0 0
    %504 = vmatpush1.bf16.msra.mxu0 0
    %505 = vmatprep.subr.bf16.mxu0 0
    %506 = vmatpush1.bf16.msra.mxu0 0
    %507 = vmatprep.subr.bf16.mxu0 0
    %508 = vmatpush1.bf16.msra.mxu0 0
    %509 = vmatprep.subr.bf16.mxu0 0
    %510 = vmatpush1.bf16.msra.mxu0 0
    %511 = vmatprep.subr.bf16.mxu0 0
    %512 = vmatpush1.bf16.msra.mxu0 0
    %513 = vmatprep.subr.bf16.mxu0 0
    %514 = vmatpush1.bf16.msra.mxu0 0
    %515 = vmatprep.mubr.bf16.mxu0 0
    %516 = vmatmul.mubr.bf16.gmra.mrb[0].mxu0 %v481
    %v517 = vpop.f32.mrb[0].mxu0
    %v518 = vadd.f32 0.0, %v517
    %v519 = vpop.f32.mrb[0].mxu0
    %v520 = vpop.f32.mrb[0].mxu0
    %v521 = vpop.f32.mrb[0].mxu0
    %522 = vdwg.mxu0
    %523 = vmatprep.subr.bf16.mxu0 0
    %524 = vmatpush1.bf16.msra.mxu0 %v374
    %525 = vmatprep.subr.bf16.mxu0 0
    %526 = vmatpush1.bf16.msra.mxu0 %v375
    %527 = vmatprep.subr.bf16.mxu0 0
    %528 = vmatpush1.bf16.msra.mxu0 %v376
    %529 = vmatprep.subr.bf16.mxu0 0
    %530 = vmatpush1.bf16.msra.mxu0 %v377
    %531 = vmatprep.subr.bf16.mxu0 0
    %532 = vmatpush1.bf16.msra.mxu0 0
    %533 = vmatprep.subr.bf16.mxu0 0
    %534 = vmatpush1.bf16.msra.mxu0 0
    %535 = vmatprep.subr.bf16.mxu0 0
    %536 = vmatpush1.bf16.msra.mxu0 0
    %537 = vmatprep.subr.bf16.mxu0 0
    %538 = vmatpush1.bf16.msra.mxu0 0
    %539 = vmatprep.subr.bf16.mxu0 0
    %540 = vmatpush1.bf16.msra.mxu0 0
    %541 = vmatprep.subr.bf16.mxu0 0
    %542 = vmatpush1.bf16.msra.mxu0 0
    %543 = vmatprep.subr.bf16.mxu0 0
    %544 = vmatpush1.bf16.msra.mxu0 0
    %545 = vmatprep.subr.bf16.mxu0 0
    %546 = vmatpush1.bf16.msra.mxu0 0
    %547 = vmatprep.subr.bf16.mxu0 0
    %548 = vmatpush1.bf16.msra.mxu0 0
    %549 = vmatprep.subr.bf16.mxu0 0
    %550 = vmatpush1.bf16.msra.mxu0 0
    %551 = vmatprep.subr.bf16.mxu0 0
    %552 = vmatpush1.bf16.msra.mxu0 0
    %553 = vmatprep.subr.bf16.mxu0 0
    %554 = vmatpush1.bf16.msra.mxu0 0
    %555 = vmatprep.mubr.bf16.mxu0 0
    %556 = vmatmul.mubr.bf16.gmra.mrb[0].mxu0 %v436
    %v557 = vpop.f32.mrb[0].mxu0
    %v558 = vadd.f32 %v518, %v557
    %v559 = vpop.f32.mrb[0].mxu0
    %v560 = vpop.f32.mrb[0].mxu0
    %v561 = vpop.f32.mrb[0].mxu0
    %562 = vdwg.mxu0
    %v563 = vadd.f32 %v558, %v426
    %v564 = vtanh.pop %v563
    %s565 = scalar_lea.vmem [#allocation3], 8
    %566 = vst.msk [vmem:[%s565] sm:$0xff] %vm159, %v564
    %v567 = vpack.c.bf16 %v479, %v479
    %v568 = vpack.c.bf16 %v564, %v564
    %s569 = scalar_lea.vmem [#allocation2], 24
    %v570 = vld [vmem:[%s569] sm:$0xff]
    %v572 = vsel %vm159, %v567, 0
    %574 = vmatprep.subr.bf16.mxu0 0
    %575 = vmatpush1.bf16.msra.mxu0 %v187
    %576 = vmatprep.subr.bf16.mxu0 0
    %577 = vmatpush1.bf16.msra.mxu0 %v188
    %578 = vmatprep.subr.bf16.mxu0 0
    %579 = vmatpush1.bf16.msra.mxu0 %v189
    %580 = vmatprep.subr.bf16.mxu0 0
    %581 = vmatpush1.bf16.msra.mxu0 %v190
    %582 = vmatprep.subr.bf16.mxu0 0
    %583 = vmatpush1.bf16.msra.mxu0 0
    %584 = vmatprep.subr.bf16.mxu0 0
    %585 = vmatpush1.bf16.msra.mxu0 0
    %586 = vmatprep.subr.bf16.mxu0 0
    %587 = vmatpush1.bf16.msra.mxu0 0
    %588 = vmatprep.subr.bf16.mxu0 0
    %589 = vmatpush1.bf16.msra.mxu0 0
    %590 = vmatprep.subr.bf16.mxu0 0
    %591 = vmatpush1.bf16.msra.mxu0 0
    %592 = vmatprep.subr.bf16.mxu0 0
    %593 = vmatpush1.bf16.msra.mxu0 0
    %594 = vmatprep.subr.bf16.mxu0 0
    %595 = vmatpush1.bf16.msra.mxu0 0
    %596 = vmatprep.subr.bf16.mxu0 0
    %597 = vmatpush1.bf16.msra.mxu0 0
    %598 = vmatprep.subr.bf16.mxu0 0
    %599 = vmatpush1.bf16.msra.mxu0 0
    %600 = vmatprep.subr.bf16.mxu0 0
    %601 = vmatpush1.bf16.msra.mxu0 0
    %602 = vmatprep.subr.bf16.mxu0 0
    %603 = vmatpush1.bf16.msra.mxu0 0
    %604 = vmatprep.subr.bf16.mxu0 0
    %605 = vmatpush1.bf16.msra.mxu0 0
    %606 = vmatprep.mubr.bf16.mxu0 0
    %607 = vmatmul.mubr.bf16.gmra.mrb[0].mxu0 %v572
    %v608 = vpop.f32.mrb[0].mxu0
    %v609 = vadd.f32 0.0, %v608
    %v610 = vpop.f32.mrb[0].mxu0
    %v611 = vpop.f32.mrb[0].mxu0
    %v612 = vpop.f32.mrb[0].mxu0
    %613 = vdwg.mxu0
    %v614 = vadd.f32 %v570, %v609
    %v615 = vtanh.pop %v614
    %v617 = vsel %vm159, %v568, 0
    %619 = vmatprep.subr.bf16.mxu0 0
    %620 = vmatpush1.bf16.msra.mxu0 %v307
    %621 = vmatprep.subr.bf16.mxu0 0
    %622 = vmatpush1.bf16.msra.mxu0 %v308
    %623 = vmatprep.subr.bf16.mxu0 0
    %624 = vmatpush1.bf16.msra.mxu0 %v309
    %625 = vmatprep.subr.bf16.mxu0 0
    %626 = vmatpush1.bf16.msra.mxu0 %v310
    %627 = vmatprep.subr.bf16.mxu0 0
    %628 = vmatpush1.bf16.msra.mxu0 0
    %629 = vmatprep.subr.bf16.mxu0 0
    %630 = vmatpush1.bf16.msra.mxu0 0
    %631 = vmatprep.subr.bf16.mxu0 0
    %632 = vmatpush1.bf16.msra.mxu0 0
    %633 = vmatprep.subr.bf16.mxu0 0
    %634 = vmatpush1.bf16.msra.mxu0 0
    %635 = vmatprep.subr.bf16.mxu0 0
    %636 = vmatpush1.bf16.msra.mxu0 0
    %637 = vmatprep.subr.bf16.mxu0 0
    %638 = vmatpush1.bf16.msra.mxu0 0
    %639 = vmatprep.subr.bf16.mxu0 0
    %640 = vmatpush1.bf16.msra.mxu0 0
    %641 = vmatprep.subr.bf16.mxu0 0
    %642 = vmatpush1.bf16.msra.mxu0 0
    %643 = vmatprep.subr.bf16.mxu0 0
    %644 = vmatpush1.bf16.msra.mxu0 0
    %645 = vmatprep.subr.bf16.mxu0 0
    %646 = vmatpush1.bf16.msra.mxu0 0
    %647 = vmatprep.subr.bf16.mxu0 0
    %648 = vmatpush1.bf16.msra.mxu0 0
    %649 = vmatprep.subr.bf16.mxu0 0
    %650 = vmatpush1.bf16.msra.mxu0 0
    %651 = vmatprep.mubr.bf16.mxu0 0
    %652 = vmatmul.mubr.bf16.gmra.mrb[0].mxu0 %v617
    %v653 = vpop.f32.mrb[0].mxu0
    %v654 = vadd.f32 0.0, %v653
    %v655 = vpop.f32.mrb[0].mxu0
    %v656 = vpop.f32.mrb[0].mxu0
    %v657 = vpop.f32.mrb[0].mxu0
    %658 = vdwg.mxu0
    %659 = vmatprep.subr.bf16.mxu0 0
    %660 = vmatpush1.bf16.msra.mxu0 %v374
    %661 = vmatprep.subr.bf16.mxu0 0
    %662 = vmatpush1.bf16.msra.mxu0 %v375
    %663 = vmatprep.subr.bf16.mxu0 0
    %664 = vmatpush1.bf16.msra.mxu0 %v376
    %665 = vmatprep.subr.bf16.mxu0 0
    %666 = vmatpush1.bf16.msra.mxu0 %v377
    %667 = vmatprep.subr.bf16.mxu0 0
    %668 = vmatpush1.bf16.msra.mxu0 0
    %669 = vmatprep.subr.bf16.mxu0 0
    %670 = vmatpush1.bf16.msra.mxu0 0
    %671 = vmatprep.subr.bf16.mxu0 0
    %672 = vmatpush1.bf16.msra.mxu0 0
    %673 = vmatprep.subr.bf16.mxu0 0
    %674 = vmatpush1.bf16.msra.mxu0 0
    %675 = vmatprep.subr.bf16.mxu0 0
    %676 = vmatpush1.bf16.msra.mxu0 0
    %677 = vmatprep.subr.bf16.mxu0 0
    %678 = vmatpush1.bf16.msra.mxu0 0
    %679 = vmatprep.subr.bf16.mxu0 0
    %680 = vmatpush1.bf16.msra.mxu0 0
    %681 = vmatprep.subr.bf16.mxu0 0
    %682 = vmatpush1.bf16.msra.mxu0 0
    %683 = vmatprep.subr.bf16.mxu0 0
    %684 = vmatpush1.bf16.msra.mxu0 0
    %685 = vmatprep.subr.bf16.mxu0 0
    %686 = vmatpush1.bf16.msra.mxu0 0
    %687 = vmatprep.subr.bf16.mxu0 0
    %688 = vmatpush1.bf16.msra.mxu0 0
    %689 = vmatprep.subr.bf16.mxu0 0
    %690 = vmatpush1.bf16.msra.mxu0 0
    %691 = vmatprep.mubr.bf16.mxu0 0
    %692 = vmatmul.mubr.bf16.gmra.mrb[0].mxu0 %v572
    %v693 = vpop.f32.mrb[0].mxu0
    %v694 = vadd.f32 %v654, %v693
    %v695 = vpop.f32.mrb[0].mxu0
    %v696 = vpop.f32.mrb[0].mxu0
    %v697 = vpop.f32.mrb[0].mxu0
    %698 = vdwg.mxu0
    %v699 = vadd.f32 %v694, %v426
    %v700 = vtanh.pop %v699
    %s701 = scalar_lea.vmem [#allocation3], 16
    %702 = vst.msk [vmem:[%s701] sm:$0xff] %vm159, %v700
    %v703 = vpack.c.bf16 %v615, %v615
    %v704 = vpack.c.bf16 %v700, %v700
    %s705 = scalar_lea.vmem [#allocation2], 32
    %v706 = vld [vmem:[%s705] sm:$0xff]
    %v708 = vsel %vm159, %v703, 0
    %710 = vmatprep.subr.bf16.mxu0 0
    %711 = vmatpush1.bf16.msra.mxu0 %v187
    %712 = vmatprep.subr.bf16.mxu0 0
    %713 = vmatpush1.bf16.msra.mxu0 %v188
    %714 = vmatprep.subr.bf16.mxu0 0
    %715 = vmatpush1.bf16.msra.mxu0 %v189
    %716 = vmatprep.subr.bf16.mxu0 0
    %717 = vmatpush1.bf16.msra.mxu0 %v190
    %718 = vmatprep.subr.bf16.mxu0 0
    %719 = vmatpush1.bf16.msra.mxu0 0
    %720 = vmatprep.subr.bf16.mxu0 0
    %721 = vmatpush1.bf16.msra.mxu0 0
    %722 = vmatprep.subr.bf16.mxu0 0
    %723 = vmatpush1.bf16.msra.mxu0 0
    %724 = vmatprep.subr.bf16.mxu0 0
    %725 = vmatpush1.bf16.msra.mxu0 0
    %726 = vmatprep.subr.bf16.mxu0 0
    %727 = vmatpush1.bf16.msra.mxu0 0
    %728 = vmatprep.subr.bf16.mxu0 0
    %729 = vmatpush1.bf16.msra.mxu0 0
    %730 = vmatprep.subr.bf16.mxu0 0
    %731 = vmatpush1.bf16.msra.mxu0 0
    %732 = vmatprep.subr.bf16.mxu0 0
    %733 = vmatpush1.bf16.msra.mxu0 0
    %734 = vmatprep.subr.bf16.mxu0 0
    %735 = vmatpush1.bf16.msra.mxu0 0
    %736 = vmatprep.subr.bf16.mxu0 0
    %737 = vmatpush1.bf16.msra.mxu0 0
    %738 = vmatprep.subr.bf16.mxu0 0
    %739 = vmatpush1.bf16.msra.mxu0 0
    %740 = vmatprep.subr.bf16.mxu0 0
    %741 = vmatpush1.bf16.msra.mxu0 0
    %742 = vmatprep.mubr.bf16.mxu0 0
    %743 = vmatmul.mubr.bf16.gmra.mrb[0].mxu0 %v708
    %v744 = vpop.f32.mrb[0].mxu0
    %v745 = vadd.f32 0.0, %v744
    %v746 = vpop.f32.mrb[0].mxu0
    %v747 = vpop.f32.mrb[0].mxu0
    %v748 = vpop.f32.mrb[0].mxu0
    %749 = vdwg.mxu0
    %v750 = vadd.f32 %v706, %v745
    %v751 = vtanh.pop %v750
    %v753 = vsel %vm159, %v704, 0
    %755 = vmatprep.subr.bf16.mxu0 0
    %756 = vmatpush1.bf16.msra.mxu0 %v307
    %757 = vmatprep.subr.bf16.mxu0 0
    %758 = vmatpush1.bf16.msra.mxu0 %v308
    %759 = vmatprep.subr.bf16.mxu0 0
    %760 = vmatpush1.bf16.msra.mxu0 %v309
    %761 = vmatprep.subr.bf16.mxu0 0
    %762 = vmatpush1.bf16.msra.mxu0 %v310
    %763 = vmatprep.subr.bf16.mxu0 0
    %764 = vmatpush1.bf16.msra.mxu0 0
    %765 = vmatprep.subr.bf16.mxu0 0
    %766 = vmatpush1.bf16.msra.mxu0 0
    %767 = vmatprep.subr.bf16.mxu0 0
    %768 = vmatpush1.bf16.msra.mxu0 0
    %769 = vmatprep.subr.bf16.mxu0 0
    %770 = vmatpush1.bf16.msra.mxu0 0
    %771 = vmatprep.subr.bf16.mxu0 0
    %772 = vmatpush1.bf16.msra.mxu0 0
    %773 = vmatprep.subr.bf16.mxu0 0
    %774 = vmatpush1.bf16.msra.mxu0 0
    %775 = vmatprep.subr.bf16.mxu0 0
    %776 = vmatpush1.bf16.msra.mxu0 0
    %777 = vmatprep.subr.bf16.mxu0 0
    %778 = vmatpush1.bf16.msra.mxu0 0
    %779 = vmatprep.subr.bf16.mxu0 0
    %780 = vmatpush1.bf16.msra.mxu0 0
    %781 = vmatprep.subr.bf16.mxu0 0
    %782 = vmatpush1.bf16.msra.mxu0 0
    %783 = vmatprep.subr.bf16.mxu0 0
    %784 = vmatpush1.bf16.msra.mxu0 0
    %785 = vmatprep.subr.bf16.mxu0 0
    %786 = vmatpush1.bf16.msra.mxu0 0
    %787 = vmatprep.mubr.bf16.mxu0 0
    %788 = vmatmul.mubr.bf16.gmra.mrb[0].mxu0 %v753
    %v789 = vpop.f32.mrb[0].mxu0
    %v790 = vadd.f32 0.0, %v789
    %v791 = vpop.f32.mrb[0].mxu0
    %v792 = vpop.f32.mrb[0].mxu0
    %v793 = vpop.f32.mrb[0].mxu0
    %794 = vdwg.mxu0
    %795 = vmatprep.subr.bf16.mxu0 0
    %796 = vmatpush1.bf16.msra.mxu0 %v374
    %797 = vmatprep.subr.bf16.mxu0 0
    %798 = vmatpush1.bf16.msra.mxu0 %v375
    %799 = vmatprep.subr.bf16.mxu0 0
    %800 = vmatpush1.bf16.msra.mxu0 %v376
    %801 = vmatprep.subr.bf16.mxu0 0
    %802 = vmatpush1.bf16.msra.mxu0 %v377
    %803 = vmatprep.subr.bf16.mxu0 0
    %804 = vmatpush1.bf16.msra.mxu0 0
    %805 = vmatprep.subr.bf16.mxu0 0
    %806 = vmatpush1.bf16.msra.mxu0 0
    %807 = vmatprep.subr.bf16.mxu0 0
    %808 = vmatpush1.bf16.msra.mxu0 0
    %809 = vmatprep.subr.bf16.mxu0 0
    %810 = vmatpush1.bf16.msra.mxu0 0
    %811 = vmatprep.subr.bf16.mxu0 0
    %812 = vmatpush1.bf16.msra.mxu0 0
    %813 = vmatprep.subr.bf16.mxu0 0
    %814 = vmatpush1.bf16.msra.mxu0 0
    %815 = vmatprep.subr.bf16.mxu0 0
    %816 = vmatpush1.bf16.msra.mxu0 0
    %817 = vmatprep.subr.bf16.mxu0 0
    %818 = vmatpush1.bf16.msra.mxu0 0
    %819 = vmatprep.subr.bf16.mxu0 0
    %820 = vmatpush1.bf16.msra.mxu0 0
    %821 = vmatprep.subr.bf16.mxu0 0
    %822 = vmatpush1.bf16.msra.mxu0 0
    %823 = vmatprep.subr.bf16.mxu0 0
    %824 = vmatpush1.bf16.msra.mxu0 0
    %825 = vmatprep.subr.bf16.mxu0 0
    %826 = vmatpush1.bf16.msra.mxu0 0
    %827 = vmatprep.mubr.bf16.mxu0 0
    %828 = vmatmul.mubr.bf16.gmra.mrb[0].mxu0 %v708
    %v829 = vpop.f32.mrb[0].mxu0
    %v830 = vadd.f32 %v790, %v829
    %v831 = vpop.f32.mrb[0].mxu0
    %v832 = vpop.f32.mrb[0].mxu0
    %v833 = vpop.f32.mrb[0].mxu0
    %834 = vdwg.mxu0
    %v835 = vadd.f32 %v830, %v426
    %v836 = vtanh.pop %v835
    %s837 = scalar_lea.vmem [#allocation3], 24
    %838 = vst.msk [vmem:[%s837] sm:$0xff] %vm159, %v836
    %v839 = vpack.c.bf16 %v751, %v751
    %v840 = vpack.c.bf16 %v836, %v836
    %s841 = scalar_lea.vmem [#allocation2], 40
    %v842 = vld [vmem:[%s841] sm:$0xff]
    %v844 = vsel %vm159, %v839, 0
    %846 = vmatprep.subr.bf16.mxu0 0
    %847 = vmatpush1.bf16.msra.mxu0 %v187
    %848 = vmatprep.subr.bf16.mxu0 0
    %849 = vmatpush1.bf16.msra.mxu0 %v188
    %850 = vmatprep.subr.bf16.mxu0 0
    %851 = vmatpush1.bf16.msra.mxu0 %v189
    %852 = vmatprep.subr.bf16.mxu0 0
    %853 = vmatpush1.bf16.msra.mxu0 %v190
    %854 = vmatprep.subr.bf16.mxu0 0
    %855 = vmatpush1.bf16.msra.mxu0 0
    %856 = vmatprep.subr.bf16.mxu0 0
    %857 = vmatpush1.bf16.msra.mxu0 0
    %858 = vmatprep.subr.bf16.mxu0 0
    %859 = vmatpush1.bf16.msra.mxu0 0
    %860 = vmatprep.subr.bf16.mxu0 0
    %861 = vmatpush1.bf16.msra.mxu0 0
    %862 = vmatprep.subr.bf16.mxu0 0
    %863 = vmatpush1.bf16.msra.mxu0 0
    %864 = vmatprep.subr.bf16.mxu0 0
    %865 = vmatpush1.bf16.msra.mxu0 0
    %866 = vmatprep.subr.bf16.mxu0 0
    %867 = vmatpush1.bf16.msra.mxu0 0
    %868 = vmatprep.subr.bf16.mxu0 0
    %869 = vmatpush1.bf16.msra.mxu0 0
    %870 = vmatprep.subr.bf16.mxu0 0
    %871 = vmatpush1.bf16.msra.mxu0 0
    %872 = vmatprep.subr.bf16.mxu0 0
    %873 = vmatpush1.bf16.msra.mxu0 0
    %874 = vmatprep.subr.bf16.mxu0 0
    %875 = vmatpush1.bf16.msra.mxu0 0
    %876 = vmatprep.subr.bf16.mxu0 0
    %877 = vmatpush1.bf16.msra.mxu0 0
    %878 = vmatprep.mubr.bf16.mxu0 0
    %879 = vmatmul.mubr.bf16.gmra.mrb[0].mxu0 %v844
    %v880 = vpop.f32.mrb[0].mxu0
    %v881 = vadd.f32 0.0, %v880
    %v882 = vpop.f32.mrb[0].mxu0
    %v883 = vpop.f32.mrb[0].mxu0
    %v884 = vpop.f32.mrb[0].mxu0
    %885 = vdwg.mxu0
    %v886 = vadd.f32 %v842, %v881
    %v887 = vtanh.pop %v886
    %v889 = vsel %vm159, %v840, 0
    %891 = vmatprep.subr.bf16.mxu0 0
    %892 = vmatpush1.bf16.msra.mxu0 %v307
    %893 = vmatprep.subr.bf16.mxu0 0
    %894 = vmatpush1.bf16.msra.mxu0 %v308
    %895 = vmatprep.subr.bf16.mxu0 0
    %896 = vmatpush1.bf16.msra.mxu0 %v309
    %897 = vmatprep.subr.bf16.mxu0 0
    %898 = vmatpush1.bf16.msra.mxu0 %v310
    %899 = vmatprep.subr.bf16.mxu0 0
    %900 = vmatpush1.bf16.msra.mxu0 0
    %901 = vmatprep.subr.bf16.mxu0 0
    %902 = vmatpush1.bf16.msra.mxu0 0
    %903 = vmatprep.subr.bf16.mxu0 0
    %904 = vmatpush1.bf16.msra.mxu0 0
    %905 = vmatprep.subr.bf16.mxu0 0
    %906 = vmatpush1.bf16.msra.mxu0 0
    %907 = vmatprep.subr.bf16.mxu0 0
    %908 = vmatpush1.bf16.msra.mxu0 0
    %909 = vmatprep.subr.bf16.mxu0 0
    %910 = vmatpush1.bf16.msra.mxu0 0
    %911 = vmatprep.subr.bf16.mxu0 0
    %912 = vmatpush1.bf16.msra.mxu0 0
    %913 = vmatprep.subr.bf16.mxu0 0
    %914 = vmatpush1.bf16.msra.mxu0 0
    %915 = vmatprep.subr.bf16.mxu0 0
    %916 = vmatpush1.bf16.msra.mxu0 0
    %917 = vmatprep.subr.bf16.mxu0 0
    %918 = vmatpush1.bf16.msra.mxu0 0
    %919 = vmatprep.subr.bf16.mxu0 0
    %920 = vmatpush1.bf16.msra.mxu0 0
    %921 = vmatprep.subr.bf16.mxu0 0
    %922 = vmatpush1.bf16.msra.mxu0 0
    %923 = vmatprep.mubr.bf16.mxu0 0
    %924 = vmatmul.mubr.bf16.gmra.mrb[0].mxu0 %v889
    %v925 = vpop.f32.mrb[0].mxu0
    %v926 = vadd.f32 0.0, %v925
    %v927 = vpop.f32.mrb[0].mxu0
    %v928 = vpop.f32.mrb[0].mxu0
    %v929 = vpop.f32.mrb[0].mxu0
    %930 = vdwg.mxu0
    %931 = vmatprep.subr.bf16.mxu0 0
    %932 = vmatpush1.bf16.msra.mxu0 %v374
    %933 = vmatprep.subr.bf16.mxu0 0
    %934 = vmatpush1.bf16.msra.mxu0 %v375
    %935 = vmatprep.subr.bf16.mxu0 0
    %936 = vmatpush1.bf16.msra.mxu0 %v376
    %937 = vmatprep.subr.bf16.mxu0 0
    %938 = vmatpush1.bf16.msra.mxu0 %v377
    %939 = vmatprep.subr.bf16.mxu0 0
    %940 = vmatpush1.bf16.msra.mxu0 0
    %941 = vmatprep.subr.bf16.mxu0 0
    %942 = vmatpush1.bf16.msra.mxu0 0
    %943 = vmatprep.subr.bf16.mxu0 0
    %944 = vmatpush1.bf16.msra.mxu0 0
    %945 = vmatprep.subr.bf16.mxu0 0
    %946 = vmatpush1.bf16.msra.mxu0 0
    %947 = vmatprep.subr.bf16.mxu0 0
    %948 = vmatpush1.bf16.msra.mxu0 0
    %949 = vmatprep.subr.bf16.mxu0 0
    %950 = vmatpush1.bf16.msra.mxu0 0
    %951 = vmatprep.subr.bf16.mxu0 0
    %952 = vmatpush1.bf16.msra.mxu0 0
    %953 = vmatprep.subr.bf16.mxu0 0
    %954 = vmatpush1.bf16.msra.mxu0 0
    %955 = vmatprep.subr.bf16.mxu0 0
    %956 = vmatpush1.bf16.msra.mxu0 0
    %957 = vmatprep.subr.bf16.mxu0 0
    %958 = vmatpush1.bf16.msra.mxu0 0
    %959 = vmatprep.subr.bf16.mxu0 0
    %960 = vmatpush1.bf16.msra.mxu0 0
    %961 = vmatprep.subr.bf16.mxu0 0
    %962 = vmatpush1.bf16.msra.mxu0 0
    %963 = vmatprep.mubr.bf16.mxu0 0
    %964 = vmatmul.mubr.bf16.gmra.mrb[0].mxu0 %v844
    %v965 = vpop.f32.mrb[0].mxu0
    %v966 = vadd.f32 %v926, %v965
    %v967 = vpop.f32.mrb[0].mxu0
    %v968 = vpop.f32.mrb[0].mxu0
    %v969 = vpop.f32.mrb[0].mxu0
    %970 = vdwg.mxu0
    %v971 = vadd.f32 %v966, %v426
    %v972 = vtanh.pop %v971
    %s973 = scalar_lea.vmem [#allocation3], 32
    %974 = vst.msk [vmem:[%s973] sm:$0xff] %vm159, %v972
    %v975 = vpack.c.bf16 %v887, %v887
    %v976 = vpack.c.bf16 %v972, %v972
    %s977 = scalar_lea.vmem [#allocation2], 48
    %v978 = vld [vmem:[%s977] sm:$0xff]
    %v980 = vsel %vm159, %v975, 0
    %982 = vmatprep.subr.bf16.mxu0 0
    %983 = vmatpush1.bf16.msra.mxu0 %v187
    %984 = vmatprep.subr.bf16.mxu0 0
    %985 = vmatpush1.bf16.msra.mxu0 %v188
    %986 = vmatprep.subr.bf16.mxu0 0
    %987 = vmatpush1.bf16.msra.mxu0 %v189
    %988 = vmatprep.subr.bf16.mxu0 0
    %989 = vmatpush1.bf16.msra.mxu0 %v190
    %990 = vmatprep.subr.bf16.mxu0 0
    %991 = vmatpush1.bf16.msra.mxu0 0
    %992 = vmatprep.subr.bf16.mxu0 0
    %993 = vmatpush1.bf16.msra.mxu0 0
    %994 = vmatprep.subr.bf16.mxu0 0
    %995 = vmatpush1.bf16.msra.mxu0 0
    %996 = vmatprep.subr.bf16.mxu0 0
    %997 = vmatpush1.bf16.msra.mxu0 0
    %998 = vmatprep.subr.bf16.mxu0 0
    %999 = vmatpush1.bf16.msra.mxu0 0
    %1000 = vmatprep.subr.bf16.mxu0 0
    %1001 = vmatpush1.bf16.msra.mxu0 0
    %1002 = vmatprep.subr.bf16.mxu0 0
    %1003 = vmatpush1.bf16.msra.mxu0 0
    %1004 = vmatprep.subr.bf16.mxu0 0
    %1005 = vmatpush1.bf16.msra.mxu0 0
    %1006 = vmatprep.subr.bf16.mxu0 0
    %1007 = vmatpush1.bf16.msra.mxu0 0
    %1008 = vmatprep.subr.bf16.mxu0 0
    %1009 = vmatpush1.bf16.msra.mxu0 0
    %1010 = vmatprep.subr.bf16.mxu0 0
    %1011 = vmatpush1.bf16.msra.mxu0 0
    %1012 = vmatprep.subr.bf16.mxu0 0
    %1013 = vmatpush1.bf16.msra.mxu0 0
    %1014 = vmatprep.mubr.bf16.mxu0 0
    %1015 = vmatmul.mubr.bf16.gmra.mrb[0].mxu0 %v980
    %v1016 = vpop.f32.mrb[0].mxu0
    %v1017 = vadd.f32 0.0, %v1016
    %v1018 = vpop.f32.mrb[0].mxu0
    %v1019 = vpop.f32.mrb[0].mxu0
    %v1020 = vpop.f32.mrb[0].mxu0
    %1021 = vdwg.mxu0
    %v1022 = vadd.f32 %v978, %v1017
    %v1023 = vtanh.pop %v1022
    %v1025 = vsel %vm159, %v976, 0
    %1027 = vmatprep.subr.bf16.mxu0 0
    %1028 = vmatpush1.bf16.msra.mxu0 %v307
    %1029 = vmatprep.subr.bf16.mxu0 0
    %1030 = vmatpush1.bf16.msra.mxu0 %v308
    %1031 = vmatprep.subr.bf16.mxu0 0
    %1032 = vmatpush1.bf16.msra.mxu0 %v309
    %1033 = vmatprep.subr.bf16.mxu0 0
    %1034 = vmatpush1.bf16.msra.mxu0 %v310
    %1035 = vmatprep.subr.bf16.mxu0 0
    %1036 = vmatpush1.bf16.msra.mxu0 0
    %1037 = vmatprep.subr.bf16.mxu0 0
    %1038 = vmatpush1.bf16.msra.mxu0 0
    %1039 = vmatprep.subr.bf16.mxu0 0
    %1040 = vmatpush1.bf16.msra.mxu0 0
    %1041 = vmatprep.subr.bf16.mxu0 0
    %1042 = vmatpush1.bf16.msra.mxu0 0
    %1043 = vmatprep.subr.bf16.mxu0 0
    %1044 = vmatpush1.bf16.msra.mxu0 0
    %1045 = vmatprep.subr.bf16.mxu0 0
    %1046 = vmatpush1.bf16.msra.mxu0 0
    %1047 = vmatprep.subr.bf16.mxu0 0
    %1048 = vmatpush1.bf16.msra.mxu0 0
    %1049 = vmatprep.subr.bf16.mxu0 0
    %1050 = vmatpush1.bf16.msra.mxu0 0
    %1051 = vmatprep.subr.bf16.mxu0 0
    %1052 = vmatpush1.bf16.msra.mxu0 0
    %1053 = vmatprep.subr.bf16.mxu0 0
    %1054 = vmatpush1.bf16.msra.mxu0 0
    %1055 = vmatprep.subr.bf16.mxu0 0
    %1056 = vmatpush1.bf16.msra.mxu0 0
    %1057 = vmatprep.subr.bf16.mxu0 0
    %1058 = vmatpush1.bf16.msra.mxu0 0
    %1059 = vmatprep.mubr.bf16.mxu0 0
    %1060 = vmatmul.mubr.bf16.gmra.mrb[0].mxu0 %v1025
    %v1061 = vpop.f32.mrb[0].mxu0
    %v1062 = vadd.f32 0.0, %v1061
    %v1063 = vpop.f32.mrb[0].mxu0
    %v1064 = vpop.f32.mrb[0].mxu0
    %v1065 = vpop.f32.mrb[0].mxu0
    %1066 = vdwg.mxu0
    %1067 = vmatprep.subr.bf16.mxu0 0
    %1068 = vmatpush1.bf16.msra.mxu0 %v374
    %1069 = vmatprep.subr.bf16.mxu0 0
    %1070 = vmatpush1.bf16.msra.mxu0 %v375
    %1071 = vmatprep.subr.bf16.mxu0 0
    %1072 = vmatpush1.bf16.msra.mxu0 %v376
    %1073 = vmatprep.subr.bf16.mxu0 0
    %1074 = vmatpush1.bf16.msra.mxu0 %v377
    %1075 = vmatprep.subr.bf16.mxu0 0
    %1076 = vmatpush1.bf16.msra.mxu0 0
    %1077 = vmatprep.subr.bf16.mxu0 0
    %1078 = vmatpush1.bf16.msra.mxu0 0
    %1079 = vmatprep.subr.bf16.mxu0 0
    %1080 = vmatpush1.bf16.msra.mxu0 0
    %1081 = vmatprep.subr.bf16.mxu0 0
    %1082 = vmatpush1.bf16.msra.mxu0 0
    %1083 = vmatprep.subr.bf16.mxu0 0
    %1084 = vmatpush1.bf16.msra.mxu0 0
    %1085 = vmatprep.subr.bf16.mxu0 0
    %1086 = vmatpush1.bf16.msra.mxu0 0
    %1087 = vmatprep.subr.bf16.mxu0 0
    %1088 = vmatpush1.bf16.msra.mxu0 0
    %1089 = vmatprep.subr.bf16.mxu0 0
    %1090 = vmatpush1.bf16.msra.mxu0 0
    %1091 = vmatprep.subr.bf16.mxu0 0
    %1092 = vmatpush1.bf16.msra.mxu0 0
    %1093 = vmatprep.subr.bf16.mxu0 0
    %1094 = vmatpush1.bf16.msra.mxu0 0
    %1095 = vmatprep.subr.bf16.mxu0 0
    %1096 = vmatpush1.bf16.msra.mxu0 0
    %1097 = vmatprep.subr.bf16.mxu0 0
    %1098 = vmatpush1.bf16.msra.mxu0 0
    %1099 = vmatprep.mubr.bf16.mxu0 0
    %1100 = vmatmul.mubr.bf16.gmra.mrb[0].mxu0 %v980
    %v1101 = vpop.f32.mrb[0].mxu0
    %v1102 = vadd.f32 %v1062, %v1101
    %v1103 = vpop.f32.mrb[0].mxu0
    %v1104 = vpop.f32.mrb[0].mxu0
    %v1105 = vpop.f32.mrb[0].mxu0
    %1106 = vdwg.mxu0
    %v1107 = vadd.f32 %v1102, %v426
    %v1108 = vtanh.pop %v1107
    %s1109 = scalar_lea.vmem [#allocation3], 40
    %1110 = vst.msk [vmem:[%s1109] sm:$0xff] %vm159, %v1108
    %v1111 = vpack.c.bf16 %v1023, %v1023
    %v1112 = vpack.c.bf16 %v1108, %v1108
    %s1113 = scalar_lea.vmem [#allocation2], 56
    %v1114 = vld [vmem:[%s1113] sm:$0xff]
    %v1116 = vsel %vm159, %v1111, 0
    %1118 = vmatprep.subr.bf16.mxu0 0
    %1119 = vmatpush1.bf16.msra.mxu0 %v187
    %1120 = vmatprep.subr.bf16.mxu0 0
    %1121 = vmatpush1.bf16.msra.mxu0 %v188
    %1122 = vmatprep.subr.bf16.mxu0 0
    %1123 = vmatpush1.bf16.msra.mxu0 %v189
    %1124 = vmatprep.subr.bf16.mxu0 0
    %1125 = vmatpush1.bf16.msra.mxu0 %v190
    %1126 = vmatprep.subr.bf16.mxu0 0
    %1127 = vmatpush1.bf16.msra.mxu0 0
    %1128 = vmatprep.subr.bf16.mxu0 0
    %1129 = vmatpush1.bf16.msra.mxu0 0
    %1130 = vmatprep.subr.bf16.mxu0 0
    %1131 = vmatpush1.bf16.msra.mxu0 0
    %1132 = vmatprep.subr.bf16.mxu0 0
    %1133 = vmatpush1.bf16.msra.mxu0 0
    %1134 = vmatprep.subr.bf16.mxu0 0
    %1135 = vmatpush1.bf16.msra.mxu0 0
    %1136 = vmatprep.subr.bf16.mxu0 0
    %1137 = vmatpush1.bf16.msra.mxu0 0
    %1138 = vmatprep.subr.bf16.mxu0 0
    %1139 = vmatpush1.bf16.msra.mxu0 0
    %1140 = vmatprep.subr.bf16.mxu0 0
    %1141 = vmatpush1.bf16.msra.mxu0 0
    %1142 = vmatprep.subr.bf16.mxu0 0
    %1143 = vmatpush1.bf16.msra.mxu0 0
    %1144 = vmatprep.subr.bf16.mxu0 0
    %1145 = vmatpush1.bf16.msra.mxu0 0
    %1146 = vmatprep.subr.bf16.mxu0 0
    %1147 = vmatpush1.bf16.msra.mxu0 0
    %1148 = vmatprep.subr.bf16.mxu0 0
    %1149 = vmatpush1.bf16.msra.mxu0 0
    %1150 = vmatprep.mubr.bf16.mxu0 0
    %1151 = vmatmul.mubr.bf16.gmra.mrb[0].mxu0 %v1116
    %v1152 = vpop.f32.mrb[0].mxu0
    %v1153 = vadd.f32 0.0, %v1152
    %v1154 = vpop.f32.mrb[0].mxu0
    %v1155 = vpop.f32.mrb[0].mxu0
    %v1156 = vpop.f32.mrb[0].mxu0
    %1157 = vdwg.mxu0
    %v1158 = vadd.f32 %v1114, %v1153
    %v1159 = vtanh.pop %v1158
    %v1161 = vsel %vm159, %v1112, 0
    %1163 = vmatprep.subr.bf16.mxu0 0
    %1164 = vmatpush1.bf16.msra.mxu0 %v307
    %1165 = vmatprep.subr.bf16.mxu0 0
    %1166 = vmatpush1.bf16.msra.mxu0 %v308
    %1167 = vmatprep.subr.bf16.mxu0 0
    %1168 = vmatpush1.bf16.msra.mxu0 %v309
    %1169 = vmatprep.subr.bf16.mxu0 0
    %1170 = vmatpush1.bf16.msra.mxu0 %v310
    %1171 = vmatprep.subr.bf16.mxu0 0
    %1172 = vmatpush1.bf16.msra.mxu0 0
    %1173 = vmatprep.subr.bf16.mxu0 0
    %1174 = vmatpush1.bf16.msra.mxu0 0
    %1175 = vmatprep.subr.bf16.mxu0 0
    %1176 = vmatpush1.bf16.msra.mxu0 0
    %1177 = vmatprep.subr.bf16.mxu0 0
    %1178 = vmatpush1.bf16.msra.mxu0 0
    %1179 = vmatprep.subr.bf16.mxu0 0
    %1180 = vmatpush1.bf16.msra.mxu0 0
    %1181 = vmatprep.subr.bf16.mxu0 0
    %1182 = vmatpush1.bf16.msra.mxu0 0
    %1183 = vmatprep.subr.bf16.mxu0 0
    %1184 = vmatpush1.bf16.msra.mxu0 0
    %1185 = vmatprep.subr.bf16.mxu0 0
    %1186 = vmatpush1.bf16.msra.mxu0 0
    %1187 = vmatprep.subr.bf16.mxu0 0
    %1188 = vmatpush1.bf16.msra.mxu0 0
    %1189 = vmatprep.subr.bf16.mxu0 0
    %1190 = vmatpush1.bf16.msra.mxu0 0
    %1191 = vmatprep.subr.bf16.mxu0 0
    %1192 = vmatpush1.bf16.msra.mxu0 0
    %1193 = vmatprep.subr.bf16.mxu0 0
    %1194 = vmatpush1.bf16.msra.mxu0 0
    %1195 = vmatprep.mubr.bf16.mxu0 0
    %1196 = vmatmul.mubr.bf16.gmra.mrb[0].mxu0 %v1161
    %v1197 = vpop.f32.mrb[0].mxu0
    %v1198 = vadd.f32 0.0, %v1197
    %v1199 = vpop.f32.mrb[0].mxu0
    %v1200 = vpop.f32.mrb[0].mxu0
    %v1201 = vpop.f32.mrb[0].mxu0
    %1202 = vdwg.mxu0
    %1203 = vmatprep.subr.bf16.mxu0 0
    %1204 = vmatpush1.bf16.msra.mxu0 %v374
    %1205 = vmatprep.subr.bf16.mxu0 0
    %1206 = vmatpush1.bf16.msra.mxu0 %v375
    %1207 = vmatprep.subr.bf16.mxu0 0
    %1208 = vmatpush1.bf16.msra.mxu0 %v376
    %1209 = vmatprep.subr.bf16.mxu0 0
    %1210 = vmatpush1.bf16.msra.mxu0 %v377
    %1211 = vmatprep.subr.bf16.mxu0 0
    %1212 = vmatpush1.bf16.msra.mxu0 0
    %1213 = vmatprep.subr.bf16.mxu0 0
    %1214 = vmatpush1.bf16.msra.mxu0 0
    %1215 = vmatprep.subr.bf16.mxu0 0
    %1216 = vmatpush1.bf16.msra.mxu0 0
    %1217 = vmatprep.subr.bf16.mxu0 0
    %1218 = vmatpush1.bf16.msra.mxu0 0
    %1219 = vmatprep.subr.bf16.mxu0 0
    %1220 = vmatpush1.bf16.msra.mxu0 0
    %1221 = vmatprep.subr.bf16.mxu0 0
    %1222 = vmatpush1.bf16.msra.mxu0 0
    %1223 = vmatprep.subr.bf16.mxu0 0
    %1224 = vmatpush1.bf16.msra.mxu0 0
    %1225 = vmatprep.subr.bf16.mxu0 0
    %1226 = vmatpush1.bf16.msra.mxu0 0
    %1227 = vmatprep.subr.bf16.mxu0 0
    %1228 = vmatpush1.bf16.msra.mxu0 0
    %1229 = vmatprep.subr.bf16.mxu0 0
    %1230 = vmatpush1.bf16.msra.mxu0 0
    %1231 = vmatprep.subr.bf16.mxu0 0
    %1232 = vmatpush1.bf16.msra.mxu0 0
    %1233 = vmatprep.subr.bf16.mxu0 0
    %1234 = vmatpush1.bf16.msra.mxu0 0
    %1235 = vmatprep.mubr.bf16.mxu0 0
    %1236 = vmatmul.mubr.bf16.gmra.mrb[0].mxu0 %v1116
    %v1237 = vpop.f32.mrb[0].mxu0
    %v1238 = vadd.f32 %v1198, %v1237
    %v1239 = vpop.f32.mrb[0].mxu0
    %v1240 = vpop.f32.mrb[0].mxu0
    %v1241 = vpop.f32.mrb[0].mxu0
    %1242 = vdwg.mxu0
    %v1243 = vadd.f32 %v1238, %v426
    %v1244 = vtanh.pop %v1243
    %s1245 = scalar_lea.vmem [#allocation3], 48
    %1246 = vst.msk [vmem:[%s1245] sm:$0xff] %vm159, %v1244
    %v1247 = vpack.c.bf16 %v1159, %v1159
    %v1248 = vpack.c.bf16 %v1244, %v1244
    %v1250 = vsel %vm159, %v1248, 0
    %1252 = vmatprep.subr.bf16.mxu0 0
    %1253 = vmatpush1.bf16.msra.mxu0 %v307
    %1254 = vmatprep.subr.bf16.mxu0 0
    %1255 = vmatpush1.bf16.msra.mxu0 %v308
    %1256 = vmatprep.subr.bf16.mxu0 0
    %1257 = vmatpush1.bf16.msra.mxu0 %v309
    %1258 = vmatprep.subr.bf16.mxu0 0
    %1259 = vmatpush1.bf16.msra.mxu0 %v310
    %1260 = vmatprep.subr.bf16.mxu0 0
    %1261 = vmatpush1.bf16.msra.mxu0 0
    %1262 = vmatprep.subr.bf16.mxu0 0
    %1263 = vmatpush1.bf16.msra.mxu0 0
    %1264 = vmatprep.subr.bf16.mxu0 0
    %1265 = vmatpush1.bf16.msra.mxu0 0
    %1266 = vmatprep.subr.bf16.mxu0 0
    %1267 = vmatpush1.bf16.msra.mxu0 0
    %1268 = vmatprep.subr.bf16.mxu0 0
    %1269 = vmatpush1.bf16.msra.mxu0 0
    %1270 = vmatprep.subr.bf16.mxu0 0
    %1271 = vmatpush1.bf16.msra.mxu0 0
    %1272 = vmatprep.subr.bf16.mxu0 0
    %1273 = vmatpush1.bf16.msra.mxu0 0
    %1274 = vmatprep.subr.bf16.mxu0 0
    %1275 = vmatpush1.bf16.msra.mxu0 0
    %1276 = vmatprep.subr.bf16.mxu0 0
    %1277 = vmatpush1.bf16.msra.mxu0 0
    %1278 = vmatprep.subr.bf16.mxu0 0
    %1279 = vmatpush1.bf16.msra.mxu0 0
    %1280 = vmatprep.subr.bf16.mxu0 0
    %1281 = vmatpush1.bf16.msra.mxu0 0
    %1282 = vmatprep.subr.bf16.mxu0 0
    %1283 = vmatpush1.bf16.msra.mxu0 0
    %1284 = vmatprep.mubr.bf16.mxu0 0
    %1285 = vmatmul.mubr.bf16.gmra.mrb[0].mxu0 %v1250
    %v1286 = vpop.f32.mrb[0].mxu0
    %v1287 = vadd.f32 0.0, %v1286
    %v1288 = vpop.f32.mrb[0].mxu0
    %v1289 = vpop.f32.mrb[0].mxu0
    %v1290 = vpop.f32.mrb[0].mxu0
    %1291 = vdwg.mxu0
    %v1293 = vsel %vm159, %v1247, 0
    %1295 = vmatprep.subr.bf16.mxu0 0
    %1296 = vmatpush1.bf16.msra.mxu0 %v374
    %1297 = vmatprep.subr.bf16.mxu0 0
    %1298 = vmatpush1.bf16.msra.mxu0 %v375
    %1299 = vmatprep.subr.bf16.mxu0 0
    %1300 = vmatpush1.bf16.msra.mxu0 %v376
    %1301 = vmatprep.subr.bf16.mxu0 0
    %1302 = vmatpush1.bf16.msra.mxu0 %v377
    %1303 = vmatprep.subr.bf16.mxu0 0
    %1304 = vmatpush1.bf16.msra.mxu0 0
    %1305 = vmatprep.subr.bf16.mxu0 0
    %1306 = vmatpush1.bf16.msra.mxu0 0
    %1307 = vmatprep.subr.bf16.mxu0 0
    %1308 = vmatpush1.bf16.msra.mxu0 0
    %1309 = vmatprep.subr.bf16.mxu0 0
    %1310 = vmatpush1.bf16.msra.mxu0 0
    %1311 = vmatprep.subr.bf16.mxu0 0
    %1312 = vmatpush1.bf16.msra.mxu0 0
    %1313 = vmatprep.subr.bf16.mxu0 0
    %1314 = vmatpush1.bf16.msra.mxu0 0
    %1315 = vmatprep.subr.bf16.mxu0 0
    %1316 = vmatpush1.bf16.msra.mxu0 0
    %1317 = vmatprep.subr.bf16.mxu0 0
    %1318 = vmatpush1.bf16.msra.mxu0 0
    %1319 = vmatprep.subr.bf16.mxu0 0
    %1320 = vmatpush1.bf16.msra.mxu0 0
    %1321 = vmatprep.subr.bf16.mxu0 0
    %1322 = vmatpush1.bf16.msra.mxu0 0
    %1323 = vmatprep.subr.bf16.mxu0 0
    %1324 = vmatpush1.bf16.msra.mxu0 0
    %1325 = vmatprep.subr.bf16.mxu0 0
    %1326 = vmatpush1.bf16.msra.mxu0 0
    %1327 = vmatprep.mubr.bf16.mxu0 0
    %1328 = vmatmul.mubr.bf16.gmra.mrb[0].mxu0 %v1293
    %v1329 = vpop.f32.mrb[0].mxu0
    %v1330 = vadd.f32 %v1287, %v1329
    %v1331 = vpop.f32.mrb[0].mxu0
    %v1332 = vpop.f32.mrb[0].mxu0
    %v1333 = vpop.f32.mrb[0].mxu0
    %1334 = vdwg.mxu0
    %v1335 = vadd.f32 %v1330, %v426
    %v1336 = vtanh.pop %v1335
    %1337 = vst.msk [vmem:[#allocation3 + $0x38] sm:$0xff] %vm159, %v1336
    %1338 = vst.msk [vmem:[#allocation9] sm:$0xff] %vm159, %v1159
    %s1339 = scalar_lea.vmem [#allocation9], 8
    %1340 = vst.msk [vmem:[%s1339] sm:$0xff] %vm159, %v1336
    %v1341 = vld [vmem:[#allocation3] sm:$0xff]
    %v1342 = vld [vmem:[#allocation3 + $0x8] sm:$0xff]
    %v1343 = vld [vmem:[#allocation3 + $0x10] sm:$0xff]
    %v1344 = vld [vmem:[#allocation3 + $0x18] sm:$0xff]
    %v1345 = vld [vmem:[#allocation3 + $0x20] sm:$0xff]
    %v1346 = vld [vmem:[#allocation3 + $0x28] sm:$0xff]
    %v1347 = vld [vmem:[#allocation3 + $0x30] sm:$0xff]
    %v1348 = vld [vmem:[#allocation3 + $0x38] sm:$0xff]
    %v1349 = vld [vmem:[%s8] sm:$0x1]
    %v1350 = vld [vmem:[#allocation4] sm:$0x1]
    %1352 = vset.pattern.permute.xlu0 0
    %1353 = vperm.xlu0 %1352, %v1350
    %v1354 = vpop.permute.xlu0 %1353
    %v1356 = vlaneseq
    %v1357 = vshrl.u32 %v1356, 7
    %v1358 = vsub.s32 0, %v1357
    %v1359 = vrot.slane %v1354, %v1358
    %v1361 = vsel %vm159, %v1349, 0
    %v1364 = vsel %vm159, %v1341, 0
    %v1367 = vsel %vm159, %v1342, 0
    %v1370 = vsel %vm159, %v1343, 0
    %v1373 = vsel %vm159, %v1344, 0
    %v1376 = vsel %vm159, %v1345, 0
    %v1379 = vsel %vm159, %v1346, 0
    %v1382 = vsel %vm159, %v1347, 0
    %v1385 = vsel %vm159, %v1348, 0
    %1387 = vmatprep.subr.mxu0 0.0
    %1388 = vmatpush1.xpose.msra.mxu0 %v1364
    %1389 = vmatprep.subr.mxu0 0.0
    %1390 = vmatpush1.xpose.msra.mxu0 %v1367
    %1391 = vmatprep.subr.mxu0 0.0
    %1392 = vmatpush1.xpose.msra.mxu0 %v1370
    %1393 = vmatprep.subr.mxu0 0.0
    %1394 = vmatpush1.xpose.msra.mxu0 %v1373
    %1395 = vmatprep.subr.mxu0 0.0
    %1396 = vmatpush1.xpose.msra.mxu0 %v1376
    %1397 = vmatprep.subr.mxu0 0.0
    %1398 = vmatpush1.xpose.msra.mxu0 %v1379
    %1399 = vmatprep.subr.mxu0 0.0
    %1400 = vmatpush1.xpose.msra.mxu0 %v1382
    %1401 = vmatprep.subr.mxu0 0.0
    %1402 = vmatpush1.xpose.msra.mxu0 %v1385
    %1403 = vmatprep.subr.mxu0 0.0
    %1404 = vmatpush1.xpose.msra.mxu0 0.0
    %1405 = vmatprep.subr.mxu0 0.0
    %1406 = vmatpush1.xpose.msra.mxu0 0.0
    %1407 = vmatprep.subr.mxu0 0.0
    %1408 = vmatpush1.xpose.msra.mxu0 0.0
    %1409 = vmatprep.subr.mxu0 0.0
    %1410 = vmatpush1.xpose.msra.mxu0 0.0
    %1411 = vmatprep.subr.mxu0 0.0
    %1412 = vmatpush1.xpose.msra.mxu0 0.0
    %1413 = vmatprep.subr.mxu0 0.0
    %1414 = vmatpush1.xpose.msra.mxu0 0.0
    %1415 = vmatprep.subr.mxu0 0.0
    %1416 = vmatpush1.xpose.msra.mxu0 0.0
    %1417 = vmatprep.subr.mxu0 0.0
    %1418 = vmatpush1.xpose.msra.mxu0 0.0
    %1419 = vmatprep.subr.mxu0 0.0
    %1420 = vmatpush1.xpose.msra.mxu0 0.0
    %1421 = vmatprep.subr.mxu0 0.0
    %1422 = vmatpush1.xpose.msra.mxu0 0.0
    %1423 = vmatprep.subr.mxu0 0.0
    %1424 = vmatpush1.xpose.msra.mxu0 0.0
    %1425 = vmatprep.subr.mxu0 0.0
    %1426 = vmatpush1.xpose.msra.mxu0 0.0
    %1427 = vmatprep.subr.mxu0 0.0
    %1428 = vmatpush1.xpose.msra.mxu0 0.0
    %1429 = vmatprep.subr.mxu0 0.0
    %1430 = vmatpush1.xpose.msra.mxu0 0.0
    %1431 = vmatprep.subr.mxu0 0.0
    %1432 = vmatpush1.xpose.msra.mxu0 0.0
    %1433 = vmatprep.subr.mxu0 0.0
    %1434 = vmatpush1.xpose.msra.mxu0 0.0
    %1435 = vmatprep.subr.mxu0 0.0
    %1436 = vmatpush1.xpose.msra.mxu0 0.0
    %1437 = vmatprep.subr.mxu0 0.0
    %1438 = vmatpush1.xpose.msra.mxu0 0.0
    %1439 = vmatprep.subr.mxu0 0.0
    %1440 = vmatpush1.xpose.msra.mxu0 0.0
    %1441 = vmatprep.subr.mxu0 0.0
    %1442 = vmatpush1.xpose.msra.mxu0 0.0
    %1443 = vmatprep.subr.mxu0 0.0
    %1444 = vmatpush1.xpose.msra.mxu0 0.0
    %1445 = vmatprep.subr.mxu0 0.0
    %1446 = vmatpush1.xpose.msra.mxu0 0.0
    %1447 = vmatprep.subr.mxu0 0.0
    %1448 = vmatpush1.xpose.msra.mxu0 0.0
    %1449 = vmatprep.subr.mxu0 0.0
    %1450 = vmatpush1.xpose.msra.mxu0 0.0
    %1451 = vmatprep.mubr.f32.mxu0 0.0
    %1452 = vmatmul.mubr.f32.gmra.mrb[0].mxu0 %v1361
    %v1453 = vpop.f32.mrb[0].mxu0
    %v1454 = vadd.f32 %v1359, %v1453
    %v1455 = vpop.f32.mrb[0].mxu0
    %1456 = vdwg.mxu0
    %vm1457 = vcmask 516096
    %1458 = vst.msk [vmem:[#allocation8] sm:$0x1] %vm1457, %v1454
    // Predicated region
    $region46: #{tpu_custom_call.1} parent=1 // pred_check
      _
    $region47: #{tpu_custom_call.1} parent=1 // pred_check_branch
      %1460 = sbr.rel (0) target = $region49
    $region48: #{tpu_custom_call.1} parent=1 // pred_region
      %s1462 = ssub.s32 16, 16
      %1463 = vsyncadd [#allocation7], %s1462
      %s1465 = sshll.u32 [#allocation8], 4
      %s1466 = int_to_ptr.vmem [resolvable:$true] %s1465
      %1468 = dma.vmem_to_hbm [thread:$0]  %s1466, 16, %s10, [#allocation7]
    $region49: #{tpu_custom_call.1} parent=1 // pred_fallthru
      _
    // Predicated region
    $region50: #{tpu_custom_call.1} parent=1 // pred_check
      _
    $region51: #{tpu_custom_call.1} parent=1 // pred_check_branch
      %1470 = sbr.rel (0) target = $region53
    $region52: #{tpu_custom_call.1} parent=1 // pred_region
      %s1472 = ssub.s32 256, 256
      %1473 = vsyncadd [#allocation10], %s1472
      %s1474 = sshll.u32 [#allocation9], 4
      %s1475 = int_to_ptr.vmem [resolvable:$true] %s1474
      %1480 = dma.vmem_to_hbm [thread:$0]  %s1475, 256, %s11, [#allocation10], 128, 128, 8
    $region53: #{tpu_custom_call.1} parent=1 // pred_fallthru
      _
    // Predicated region
    $region54: #{tpu_custom_call.1} parent=1 // pred_check
      _
    $region55: #{tpu_custom_call.1} parent=1 // pred_check_branch
      %1482 = sbr.rel (0) target = $region57
    $region56: #{tpu_custom_call.1} parent=1 // pred_region
      %1483 = dma.done [#allocation7], 16
    $region57: #{tpu_custom_call.1} parent=1 // pred_fallthru
      _
    // Predicated region
    $region58: #{tpu_custom_call.1} parent=1 // pred_check
      _
    $region59: #{tpu_custom_call.1} parent=1 // pred_check_branch
      %1485 = sbr.rel (0) target = $region61
    $region60: #{tpu_custom_call.1} parent=1 // pred_region
      %1486 = dma.done [#allocation10], 256
    $region61: #{tpu_custom_call.1} parent=1 // pred_fallthru
      _
    %1487 = vsyncpa [#allocation6], 1
    %1488 = vsyncpa [#allocation7], 1
    %1489 = vsyncpa [#allocation10], 1

</llo_original>
